<compile_context>
chip_gen: v5e
topology: v5e:2x2
jax: 0.10.0
libtpu: 0.0.40
codegen_flags: <defaults>
</compile_context>

<pallas_src>
import functools

import jax
import jax.numpy as jnp
from jax import lax
from jax.experimental import pallas as pl
from jax.experimental.pallas import tpu as pltpu


def _elu(v):
    # ELU(alpha=1): x if x > 0 else exp(x) - 1 (clamp exp arg for safety)
    return jnp.where(v > 0, v, jnp.exp(jnp.minimum(v, 0.0)) - 1.0)


# ------------------------------- Pallas kernel --------------------------------
def double_conv_kernel(x_ref, wb1_ref, b1_ref, gam1_ref, bet1_ref,
                       wb2_ref, b2_ref, gam2_ref, bet2_ref,
                       grp_ref, grp2lane_ref,
                       o_ref, pad2_ref,
                       *, H, W, out_ch, cpg, use_bf16):
    Wc = W * out_ch
    cnt = float(H * W * cpg)                 # elements per (sample, group)

    def conv3x3(xpad, wb_ref, bias_lane):
        # xpad: (H+2, W*cin) lane-dense rows, top/bottom rows already zero.
        # One MXU matmul per kernel row (3 total); dx taps + horizontal 'same'
        # boundary are baked into the banded weights.
        acc = None
        for dy in range(3):
            lhs = xpad[dy:dy + H, :]
            rhs = wb_ref[dy]
            if use_bf16:                     # v6e/v7x MXU fast path
                lhs = lhs.astype(jnp.bfloat16)
                rhs = rhs.astype(jnp.bfloat16)
            t = jnp.dot(lhs, rhs, preferred_element_type=jnp.float32)
            acc = t if acc is None else acc + t
        return acc + bias_lane

    def group_norm_elu(y, gamma_lane, beta_lane):
        # y: (H, W*out_ch) lane-dense slab of ONE sample.
        # Lane->group reductions ride the MXU (it is idle otherwise);
        # variance is the exact two-pass (centered) form.
        grp = grp_ref[...]                   # (W*out_ch, G)
        g2l = grp2lane_ref[...]              # (G, W*out_ch)
        s1 = jnp.sum(jnp.dot(y, grp, preferred_element_type=jnp.float32),
                     axis=0, keepdims=True)                  # (1, G)
        mu_lane = jnp.dot(s1 * (1.0 / cnt), g2l,
                          preferred_element_type=jnp.float32)
        d = y - mu_lane
        s2 = jnp.sum(jnp.dot(d * d, grp, preferred_element_type=jnp.float32),
                     axis=0, keepdims=True)                  # (1, G)
        inv = lax.rsqrt(s2 * (1.0 / cnt) + 1e-5)
        scale = jnp.dot(inv, g2l,
                        preferred_element_type=jnp.float32) * gamma_lane
        return _elu(d * scale + beta_lane)

    # ---- conv1 -> GN1 -> ELU (input rows already zero-padded by the wrapper) --
    y = conv3x3(x_ref[0], wb1_ref, b1_ref[...])
    y = group_norm_elu(y, gam1_ref[...], bet1_ref[...])

    # ---- conv2 -> GN2 -> ELU ---------------------------------------------------
    # Row-pad y in VMEM.  Halo = only two dense full-width zero rows; the
    # interior rows are fully overwritten every step.  (We deliberately re-zero
    # the halo every step rather than gating on program_id==0: with "parallel"
    # semantics the second TensorCore's private scratch would otherwise never
    # be initialized, and two dense 256-lane row stores are negligible.)
    zrow = jnp.zeros((1, Wc), jnp.float32)
    pad2_ref[0:1, :] = zrow
    pad2_ref[H + 1:H + 2, :] = zrow
    pad2_ref[1:H + 1, :] = y
    y = conv3x3(pad2_ref[...], wb2_ref, b2_ref[...])
    y = group_norm_elu(y, gam2_ref[...], bet2_ref[...])

    # ---- lane-dense writeback (dense 256-lane stores) --------------------------
    o_ref[0] = y.astype(o_ref.dtype)


# ------------------------------- host wrappers ---------------------------------
def _banded_weights(w_hwio, W):
    """Fold horizontal taps + horizontal 'same' padding of a 3x3 conv into one
    block-banded matrix per kernel row:
      Wb[dy][wi*cin+ci, wo*cout+co] = w[dy, wi-wo+1, ci, co]  for |wi-wo| <= 1.
    Returns (3, W*cin, W*cout)."""
    kh, kw, cin, cout = w_hwio.shape
    wi = jnp.arange(W)[:, None]
    wo = jnp.arange(W)[None, :]
    dx = wi - wo + (kw // 2)                                   # (W, W)
    valid = ((dx >= 0) & (dx < kw)).astype(w_hwio.dtype)
    dx_c = jnp.clip(dx, 0, kw - 1)
    mats = []
    for dy in range(kh):
        taps = w_hwio[dy][dx_c] * valid[:, :, None, None]      # (W, W, cin, cout)
        mats.append(jnp.transpose(taps, (0, 2, 1, 3)).reshape(W * cin, W * cout))
    return jnp.stack(mats, axis=0)


def double_conv_nhwc(x, w1, b1, g1, be1, w2, b2, g2, be2, *,
                     num_groups, use_bf16=False):
    N, H, W, in_ch = x.shape
    out_ch = w1.shape[-1]
    assert out_ch % num_groups == 0
    cpg = out_ch // num_groups
    G = num_groups
    Wc = W * out_ch

    # -- constant packing (wrapper/XLA side; in a model do this once at load) --
    wb1 = _banded_weights(w1, W)                       # (3, W*in_ch, W*out_ch)
    wb2 = _banded_weights(w2, W)                       # (3, W*out_ch, W*out_ch)
    lane = lambda v: jnp.tile(v.reshape(1, out_ch), (1, W))     # (1, W*out_ch)
    b1l, gam1, bet1 = lane(b1), lane(g1), lane(be1)
    b2l, gam2, bet2 = lane(b2), lane(g2), lane(be2)
    lane_grp = (jnp.arange(Wc) % out_ch) // cpg
    grp = (lane_grp[:, None] == jnp.arange(G)[None, :]).astype(jnp.float32)
    grp2lane = grp.T                                   # (G, Wc)

    # row-pad + lane-flatten the input: vertical 'same' pad is delivered by DMA.
    x_pad = jnp.pad(x.reshape(N, H, W * in_ch), ((0, 0), (1, 1), (0, 0)))

    full = lambda a: pl.BlockSpec(a.shape, lambda b: (0,) * a.ndim)
    kernel = functools.partial(double_conv_kernel, H=H, W=W, out_ch=out_ch,
                               cpg=cpg, use_bf16=use_bf16)

    flops = N * (6 * H * (W * in_ch) * Wc       # conv1: 3 banded matmuls
                 + 6 * H * Wc * Wc              # conv2: 3 banded matmuls
                 + 8 * H * Wc * G)              # GN stat matmuls (2 convs x 2)
    ce = pl.CostEstimate(
        flops=int(flops),
        transcendentals=int(2 * N * H * Wc),
        bytes_accessed=int(4 * (x_pad.size + N * H * Wc + wb1.size + wb2.size
                                + 6 * Wc + grp.size + grp2lane.size)))

    out = pl.pallas_call(
        kernel,
        out_shape=jax.ShapeDtypeStruct((N, H, Wc), jnp.float32),
        grid_spec=pltpu.PrefetchScalarGridSpec(
            num_scalar_prefetch=0,
            grid=(N,),                      # 1 sample / step -> megacore sharding
            in_specs=[
                pl.BlockSpec((1, H + 2, W * in_ch), lambda b: (b, 0, 0)),
                full(wb1), full(b1l), full(gam1), full(bet1),
                full(wb2), full(b2l), full(gam2), full(bet2),
                full(grp), full(grp2lane),
            ],
            out_specs=pl.BlockSpec((1, H, Wc), lambda b: (b, 0, 0)),
            scratch_shapes=[pltpu.VMEM((H + 2, Wc), jnp.float32)],
        ),
        compiler_params=pltpu.CompilerParams(
            dimension_semantics=("parallel",),
            vmem_limit_bytes=32 * 1024 * 1024),
        cost_estimate=ce,
    )(x_pad, wb1, b1l, gam1, bet1, wb2, b2l, gam2, bet2, grp, grp2lane)

    return out.reshape(N, H, W, out_ch)


def double_conv_forward(x_nchw, w1, b1, g1, be1, w2, b2, g2, be2, *,
                        num_groups, use_bf16=False):
    """PyTorch-equivalent forward. Input/Output layout: NCHW."""
    x = jnp.transpose(x_nchw, (0, 2, 3, 1))            # NCHW -> NHWC
    out = double_conv_nhwc(x, w1, b1, g1, be1, w2, b2, g2, be2,
                           num_groups=num_groups, use_bf16=use_bf16)
    return jnp.transpose(out, (0, 3, 1, 2))            # NHWC -> NCHW


# ----------------------------- pure-JAX reference ------------------------------
def _ref_groupnorm(x_nhwc, gamma, beta, num_groups, eps=1e-5):
    N, H, W, C = x_nhwc.shape
    cpg = C // num_groups
    xg = x_nhwc.reshape(N, H, W, num_groups, cpg)
    mu = jnp.mean(xg, axis=(1, 2, 4), keepdims=True)
    var = jnp.mean((xg - mu) ** 2, axis=(1, 2, 4), keepdims=True)
    xn = ((xg - mu) * lax.rsqrt(var + eps)).reshape(N, H, W, C)
    return xn * gamma.reshape(1, 1, 1, C) + beta.reshape(1, 1, 1, C)


def _ref_forward_nhwc(x, w1, b1, g1, be1, w2, b2, g2, be2, num_groups):
    def conv(v, w, b):
        y = lax.conv_general_dilated(v, w, (1, 1), ((1, 1), (1, 1)),
                                     dimension_numbers=("NHWC", "HWIO", "NHWC"))
        return y + b.reshape(1, 1, 1, -1)
    y = _elu(_ref_groupnorm(conv(x, w1, b1), g1, be1, num_groups))
    y = _elu(_ref_groupnorm(conv(y, w2, b2), g2, be2, num_groups))
    return y


# ------------------------------------ main -------------------------------------
if __name__ == "__main__":
    N, in_ch, out_ch, H, W = 2, 8, 16, 16, 16
    num_groups = out_ch // 8                 # as in the PyTorch module

    key = jax.random.PRNGKey(0)
    ks = jax.random.split(key, 9)
    w1 = jax.random.normal(ks[0], (3, 3, in_ch, out_ch), jnp.float32) * 0.1
    b1 = jax.random.normal(ks[1], (out_ch,), jnp.float32) * 0.1
    g1 = 1.0 + 0.1 * jax.random.normal(ks[2], (out_ch,), jnp.float32)
    be1 = 0.1 * jax.random.normal(ks[3], (out_ch,), jnp.float32)
    w2 = jax.random.normal(ks[4], (3, 3, out_ch, out_ch), jnp.float32) * 0.1
    b2 = jax.random.normal(ks[5], (out_ch,), jnp.float32) * 0.1
    g2 = 1.0 + 0.1 * jax.random.normal(ks[6], (out_ch,), jnp.float32)
    be2 = 0.1 * jax.random.normal(ks[7], (out_ch,), jnp.float32)
    x_nchw = jax.random.normal(ks[8], (N, in_ch, H, W), jnp.float32)

    fwd = jax.jit(functools.partial(double_conv_forward, num_groups=num_groups))
    out = jax.block_until_ready(fwd(x_nchw, w1, b1, g1, be1, w2, b2, g2, be2))

    # correctness check against a pure-JAX reference
    x_nhwc = jnp.transpose(x_nchw, (0, 2, 3, 1))
    ref = _ref_forward_nhwc(x_nhwc, w1, b1, g1, be1, w2, b2, g2, be2,
                            num_groups)
    ref_nchw = jnp.transpose(ref, (0, 3, 1, 2))
    assert out.shape == (N, out_ch, H, W)
    err = float(jnp.max(jnp.abs(out - ref_nchw)))
    assert err < 1e-4, f"max abs err {err}"

    print("KERNEL_OK")
</pallas_src>

<mosaic_0001>
module attributes {stable_mosaic.version = 11 : i64} {
  func.func @double_conv_kernel(%arg0: i32, %arg1: memref<1x18x128xf32, #tpu.memory_space<vmem>>, %arg2: memref<3x128x256xf32, #tpu.memory_space<vmem>>, %arg3: memref<1x256xf32, #tpu.memory_space<vmem>>, %arg4: memref<1x256xf32, #tpu.memory_space<vmem>>, %arg5: memref<1x256xf32, #tpu.memory_space<vmem>>, %arg6: memref<3x256x256xf32, #tpu.memory_space<vmem>>, %arg7: memref<1x256xf32, #tpu.memory_space<vmem>>, %arg8: memref<1x256xf32, #tpu.memory_space<vmem>>, %arg9: memref<1x256xf32, #tpu.memory_space<vmem>>, %arg10: memref<256x2xf32, #tpu.memory_space<vmem>>, %arg11: memref<2x256xf32, #tpu.memory_space<vmem>>, %arg12: memref<1x16x256xf32, #tpu.memory_space<vmem>>, %arg13: memref<18x256xf32, #tpu.memory_space<vmem>>) attributes {dimension_semantics = [#tpu.dimension_semantics<parallel>], iteration_bounds = array<i64: 2>, scalar_prefetch = 0 : i64, scratch_operands = 1 : i64, tpu.core_type = #tpu.core_type<tc>, window_params = [{transform_indices = @transform_0, window_bounds = array<i64: 1, 18, 128>}, {pipeline_mode = #tpu.pipeline_mode<synchronous>, transform_indices = @transform_1, window_bounds = array<i64: 3, 128, 256>}, {pipeline_mode = #tpu.pipeline_mode<synchronous>, transform_indices = @transform_2, window_bounds = array<i64: 1, 256>}, {pipeline_mode = #tpu.pipeline_mode<synchronous>, transform_indices = @transform_3, window_bounds = array<i64: 1, 256>}, {pipeline_mode = #tpu.pipeline_mode<synchronous>, transform_indices = @transform_4, window_bounds = array<i64: 1, 256>}, {pipeline_mode = #tpu.pipeline_mode<synchronous>, transform_indices = @transform_5, window_bounds = array<i64: 3, 256, 256>}, {pipeline_mode = #tpu.pipeline_mode<synchronous>, transform_indices = @transform_6, window_bounds = array<i64: 1, 256>}, {pipeline_mode = #tpu.pipeline_mode<synchronous>, transform_indices = @transform_7, window_bounds = array<i64: 1, 256>}, {pipeline_mode = #tpu.pipeline_mode<synchronous>, transform_indices = @transform_8, window_bounds = array<i64: 1, 256>}, {pipeline_mode = #tpu.pipeline_mode<synchronous>, transform_indices = @transform_9, window_bounds = array<i64: 256, 2>}, {pipeline_mode = #tpu.pipeline_mode<synchronous>, transform_indices = @transform_10, window_bounds = array<i64: 2, 256>}, {transform_indices = @transform_11, window_bounds = array<i64: 1, 16, 256>}]} {
    %c0 = arith.constant 0 : index
    %c0_0 = arith.constant 0 : index
    %c0_1 = arith.constant 0 : index
    %0 = vector.load %arg1[%c0, %c0_0, %c0_1] : memref<1x18x128xf32, #tpu.memory_space<vmem>>, vector<1x18x128xf32>
    %1 = vector.shape_cast %0 : vector<1x18x128xf32> to vector<18x128xf32>
    %c0_2 = arith.constant 0 : index
    %c0_3 = arith.constant 0 : index
    %2 = vector.load %arg3[%c0_2, %c0_3] : memref<1x256xf32, #tpu.memory_space<vmem>>, vector<1x256xf32>
    %3 = vector.extract_strided_slice %1 {offsets = [0, 0], sizes = [16, 128], strides = [1, 1]} : vector<18x128xf32> to vector<16x128xf32>
    %c0_4 = arith.constant 0 : index
    %c0_5 = arith.constant 0 : index
    %c0_6 = arith.constant 0 : index
    %4 = vector.load %arg2[%c0_4, %c0_5, %c0_6] : memref<3x128x256xf32, #tpu.memory_space<vmem>>, vector<1x128x256xf32>
    %5 = vector.shape_cast %4 : vector<1x128x256xf32> to vector<128x256xf32>
    %cst = arith.constant dense<0.000000e+00> : vector<16x256xf32>
    %6 = tpu.matmul %3, %5, %cst {dimension_numbers = #tpu.dot_dimension_numbers<[1], [0], [0], [1], [0, 0, 1, 1], [], []>} : vector<16x128xf32>, vector<128x256xf32>, vector<16x256xf32> -> vector<16x256xf32>
    %7 = vector.extract_strided_slice %1 {offsets = [1, 0], sizes = [16, 128], strides = [1, 1]} : vector<18x128xf32> to vector<16x128xf32>
    %c1 = arith.constant 1 : index
    %c0_7 = arith.constant 0 : index
    %c0_8 = arith.constant 0 : index
    %8 = vector.load %arg2[%c1, %c0_7, %c0_8] : memref<3x128x256xf32, #tpu.memory_space<vmem>>, vector<1x128x256xf32>
    %9 = vector.shape_cast %8 : vector<1x128x256xf32> to vector<128x256xf32>
    %cst_9 = arith.constant dense<0.000000e+00> : vector<16x256xf32>
    %10 = tpu.matmul %7, %9, %cst_9 {dimension_numbers = #tpu.dot_dimension_numbers<[1], [0], [0], [1], [0, 0, 1, 1], [], []>} : vector<16x128xf32>, vector<128x256xf32>, vector<16x256xf32> -> vector<16x256xf32>
    %11 = arith.addf %6, %10 : vector<16x256xf32>
    %12 = vector.extract_strided_slice %1 {offsets = [2, 0], sizes = [16, 128], strides = [1, 1]} : vector<18x128xf32> to vector<16x128xf32>
    %c2 = arith.constant 2 : index
    %c0_10 = arith.constant 0 : index
    %c0_11 = arith.constant 0 : index
    %13 = vector.load %arg2[%c2, %c0_10, %c0_11] : memref<3x128x256xf32, #tpu.memory_space<vmem>>, vector<1x128x256xf32>
    %14 = vector.shape_cast %13 : vector<1x128x256xf32> to vector<128x256xf32>
    %cst_12 = arith.constant dense<0.000000e+00> : vector<16x256xf32>
    %15 = tpu.matmul %12, %14, %cst_12 {dimension_numbers = #tpu.dot_dimension_numbers<[1], [0], [0], [1], [0, 0, 1, 1], [], []>} : vector<16x128xf32>, vector<128x256xf32>, vector<16x256xf32> -> vector<16x256xf32>
    %16 = arith.addf %11, %15 : vector<16x256xf32>
    %17 = vector.broadcast %2 : vector<1x256xf32> to vector<16x256xf32>
    %18 = arith.addf %16, %17 : vector<16x256xf32>
    %c0_13 = arith.constant 0 : index
    %c0_14 = arith.constant 0 : index
    %19 = vector.load %arg4[%c0_13, %c0_14] : memref<1x256xf32, #tpu.memory_space<vmem>>, vector<1x256xf32>
    %c0_15 = arith.constant 0 : index
    %c0_16 = arith.constant 0 : index
    %20 = vector.load %arg5[%c0_15, %c0_16] : memref<1x256xf32, #tpu.memory_space<vmem>>, vector<1x256xf32>
    %c0_17 = arith.constant 0 : index
    %c0_18 = arith.constant 0 : index
    %21 = vector.load %arg10[%c0_17, %c0_18] : memref<256x2xf32, #tpu.memory_space<vmem>>, vector<256x2xf32>
    %c0_19 = arith.constant 0 : index
    %c0_20 = arith.constant 0 : index
    %22 = vector.load %arg11[%c0_19, %c0_20] : memref<2x256xf32, #tpu.memory_space<vmem>>, vector<2x256xf32>
    %cst_21 = arith.constant dense<0.000000e+00> : vector<16x2xf32>
    %23 = tpu.matmul %18, %21, %cst_21 {dimension_numbers = #tpu.dot_dimension_numbers<[1], [0], [0], [1], [0, 0, 1, 1], [], []>} : vector<16x256xf32>, vector<256x2xf32>, vector<16x2xf32> -> vector<16x2xf32>
    %cst_22 = arith.constant dense<0.000000e+00> : vector<2xf32>
    %24 = vector.multi_reduction <add>, %23, %cst_22 [0] : vector<16x2xf32> to vector<2xf32>
    %25 = vector.shape_cast %24 : vector<2xf32> to vector<1x2xf32>
    %cst_23 = arith.constant 4.8828125E-4 : f32
    %26 = vector.broadcast %cst_23 : f32 to vector<1x2xf32>
    %27 = arith.mulf %25, %26 : vector<1x2xf32>
    %cst_24 = arith.constant dense<0.000000e+00> : vector<1x256xf32>
    %28 = tpu.matmul %27, %22, %cst_24 {dimension_numbers = #tpu.dot_dimension_numbers<[1], [0], [0], [1], [0, 0, 1, 1], [], []>} : vector<1x2xf32>, vector<2x256xf32>, vector<1x256xf32> -> vector<1x256xf32>
    %29 = vector.broadcast %28 : vector<1x256xf32> to vector<16x256xf32>
    %30 = arith.subf %18, %29 : vector<16x256xf32>
    %31 = arith.mulf %30, %30 : vector<16x256xf32>
    %cst_25 = arith.constant dense<0.000000e+00> : vector<16x2xf32>
    %32 = tpu.matmul %31, %21, %cst_25 {dimension_numbers = #tpu.dot_dimension_numbers<[1], [0], [0], [1], [0, 0, 1, 1], [], []>} : vector<16x256xf32>, vector<256x2xf32>, vector<16x2xf32> -> vector<16x2xf32>
    %cst_26 = arith.constant dense<0.000000e+00> : vector<2xf32>
    %33 = vector.multi_reduction <add>, %32, %cst_26 [0] : vector<16x2xf32> to vector<2xf32>
    %34 = vector.shape_cast %33 : vector<2xf32> to vector<1x2xf32>
    %cst_27 = arith.constant 4.8828125E-4 : f32
    %35 = vector.broadcast %cst_27 : f32 to vector<1x2xf32>
    %36 = arith.mulf %34, %35 : vector<1x2xf32>
    %cst_28 = arith.constant 9.99999974E-6 : f32
    %37 = vector.broadcast %cst_28 : f32 to vector<1x2xf32>
    %38 = arith.addf %36, %37 : vector<1x2xf32>
    %39 = math.rsqrt %38 : vector<1x2xf32>
    %cst_29 = arith.constant dense<0.000000e+00> : vector<1x256xf32>
    %40 = tpu.matmul %39, %22, %cst_29 {dimension_numbers = #tpu.dot_dimension_numbers<[1], [0], [0], [1], [0, 0, 1, 1], [], []>} : vector<1x2xf32>, vector<2x256xf32>, vector<1x256xf32> -> vector<1x256xf32>
    %41 = arith.mulf %40, %19 : vector<1x256xf32>
    %42 = vector.broadcast %41 : vector<1x256xf32> to vector<16x256xf32>
    %43 = arith.mulf %30, %42 : vector<16x256xf32>
    %44 = vector.broadcast %20 : vector<1x256xf32> to vector<16x256xf32>
    %45 = arith.addf %43, %44 : vector<16x256xf32>
    %cst_30 = arith.constant 0.000000e+00 : f32
    %46 = vector.broadcast %cst_30 : f32 to vector<16x256xf32>
    %47 = arith.cmpf ogt, %45, %46 : vector<16x256xf32>
    %cst_31 = arith.constant 0.000000e+00 : f32
    %48 = vector.broadcast %cst_31 : f32 to vector<16x256xf32>
    %49 = arith.minimumf %45, %48 : vector<16x256xf32>
    %50 = math.exp %49 : vector<16x256xf32>
    %cst_32 = arith.constant 1.000000e+00 : f32
    %51 = vector.broadcast %cst_32 : f32 to vector<16x256xf32>
    %52 = arith.subf %50, %51 : vector<16x256xf32>
    %53 = arith.select %47, %45, %52 : vector<16x256xi1>, vector<16x256xf32>
    %cst_33 = arith.constant 0.000000e+00 : f32
    %54 = vector.broadcast %cst_33 : f32 to vector<1x256xf32>
    %c0_34 = arith.constant 0 : index
    %c0_35 = arith.constant 0 : index
    %55 = vector.load %arg13[%c0_34, %c0_35] : memref<18x256xf32, #tpu.memory_space<vmem>>, vector<1x256xf32>
    tpu.vector_store %arg13[%c0_34, %c0_35], %54 {strides = array<i32>} : memref<18x256xf32, #tpu.memory_space<vmem>>, vector<1x256xf32>,
    %c17 = arith.constant 17 : index
    %c0_36 = arith.constant 0 : index
    %56 = vector.load %arg13[%c17, %c0_36] : memref<18x256xf32, #tpu.memory_space<vmem>>, vector<1x256xf32>
    tpu.vector_store %arg13[%c17, %c0_36], %54 {strides = array<i32>} : memref<18x256xf32, #tpu.memory_space<vmem>>, vector<1x256xf32>,
    %c1_37 = arith.constant 1 : index
    %c0_38 = arith.constant 0 : index
    %57 = vector.load %arg13[%c1_37, %c0_38] : memref<18x256xf32, #tpu.memory_space<vmem>>, vector<16x256xf32>
    tpu.vector_store %arg13[%c1_37, %c0_38], %53 {strides = array<i32>} : memref<18x256xf32, #tpu.memory_space<vmem>>, vector<16x256xf32>,
    %c0_39 = arith.constant 0 : index
    %c0_40 = arith.constant 0 : index
    %58 = vector.load %arg13[%c0_39, %c0_40] : memref<18x256xf32, #tpu.memory_space<vmem>>, vector<18x256xf32>
    %c0_41 = arith.constant 0 : index
    %c0_42 = arith.constant 0 : index
    %59 = vector.load %arg7[%c0_41, %c0_42] : memref<1x256xf32, #tpu.memory_space<vmem>>, vector<1x256xf32>
    %60 = vector.extract_strided_slice %58 {offsets = [0, 0], sizes = [16, 256], strides = [1, 1]} : vector<18x256xf32> to vector<16x256xf32>
    %c0_43 = arith.constant 0 : index
    %c0_44 = arith.constant 0 : index
    %c0_45 = arith.constant 0 : index
    %61 = vector.load %arg6[%c0_43, %c0_44, %c0_45] : memref<3x256x256xf32, #tpu.memory_space<vmem>>, vector<1x256x256xf32>
    %62 = vector.shape_cast %61 : vector<1x256x256xf32> to vector<256x256xf32>
    %cst_46 = arith.constant dense<0.000000e+00> : vector<16x256xf32>
    %63 = tpu.matmul %60, %62, %cst_46 {dimension_numbers = #tpu.dot_dimension_numbers<[1], [0], [0], [1], [0, 0, 1, 1], [], []>} : vector<16x256xf32>, vector<256x256xf32>, vector<16x256xf32> -> vector<16x256xf32>
    %64 = vector.extract_strided_slice %58 {offsets = [1, 0], sizes = [16, 256], strides = [1, 1]} : vector<18x256xf32> to vector<16x256xf32>
    %c1_47 = arith.constant 1 : index
    %c0_48 = arith.constant 0 : index
    %c0_49 = arith.constant 0 : index
    %65 = vector.load %arg6[%c1_47, %c0_48, %c0_49] : memref<3x256x256xf32, #tpu.memory_space<vmem>>, vector<1x256x256xf32>
    %66 = vector.shape_cast %65 : vector<1x256x256xf32> to vector<256x256xf32>
    %cst_50 = arith.constant dense<0.000000e+00> : vector<16x256xf32>
    %67 = tpu.matmul %64, %66, %cst_50 {dimension_numbers = #tpu.dot_dimension_numbers<[1], [0], [0], [1], [0, 0, 1, 1], [], []>} : vector<16x256xf32>, vector<256x256xf32>, vector<16x256xf32> -> vector<16x256xf32>
    %68 = arith.addf %63, %67 : vector<16x256xf32>
    %69 = vector.extract_strided_slice %58 {offsets = [2, 0], sizes = [16, 256], strides = [1, 1]} : vector<18x256xf32> to vector<16x256xf32>
    %c2_51 = arith.constant 2 : index
    %c0_52 = arith.constant 0 : index
    %c0_53 = arith.constant 0 : index
    %70 = vector.load %arg6[%c2_51, %c0_52, %c0_53] : memref<3x256x256xf32, #tpu.memory_space<vmem>>, vector<1x256x256xf32>
    %71 = vector.shape_cast %70 : vector<1x256x256xf32> to vector<256x256xf32>
    %cst_54 = arith.constant dense<0.000000e+00> : vector<16x256xf32>
    %72 = tpu.matmul %69, %71, %cst_54 {dimension_numbers = #tpu.dot_dimension_numbers<[1], [0], [0], [1], [0, 0, 1, 1], [], []>} : vector<16x256xf32>, vector<256x256xf32>, vector<16x256xf32> -> vector<16x256xf32>
    %73 = arith.addf %68, %72 : vector<16x256xf32>
    %74 = vector.broadcast %59 : vector<1x256xf32> to vector<16x256xf32>
    %75 = arith.addf %73, %74 : vector<16x256xf32>
    %c0_55 = arith.constant 0 : index
    %c0_56 = arith.constant 0 : index
    %76 = vector.load %arg8[%c0_55, %c0_56] : memref<1x256xf32, #tpu.memory_space<vmem>>, vector<1x256xf32>
    %c0_57 = arith.constant 0 : index
    %c0_58 = arith.constant 0 : index
    %77 = vector.load %arg9[%c0_57, %c0_58] : memref<1x256xf32, #tpu.memory_space<vmem>>, vector<1x256xf32>
    %c0_59 = arith.constant 0 : index
    %c0_60 = arith.constant 0 : index
    %78 = vector.load %arg10[%c0_59, %c0_60] : memref<256x2xf32, #tpu.memory_space<vmem>>, vector<256x2xf32>
    %c0_61 = arith.constant 0 : index
    %c0_62 = arith.constant 0 : index
    %79 = vector.load %arg11[%c0_61, %c0_62] : memref<2x256xf32, #tpu.memory_space<vmem>>, vector<2x256xf32>
    %cst_63 = arith.constant dense<0.000000e+00> : vector<16x2xf32>
    %80 = tpu.matmul %75, %78, %cst_63 {dimension_numbers = #tpu.dot_dimension_numbers<[1], [0], [0], [1], [0, 0, 1, 1], [], []>} : vector<16x256xf32>, vector<256x2xf32>, vector<16x2xf32> -> vector<16x2xf32>
    %cst_64 = arith.constant dense<0.000000e+00> : vector<2xf32>
    %81 = vector.multi_reduction <add>, %80, %cst_64 [0] : vector<16x2xf32> to vector<2xf32>
    %82 = vector.shape_cast %81 : vector<2xf32> to vector<1x2xf32>
    %cst_65 = arith.constant 4.8828125E-4 : f32
    %83 = vector.broadcast %cst_65 : f32 to vector<1x2xf32>
    %84 = arith.mulf %82, %83 : vector<1x2xf32>
    %cst_66 = arith.constant dense<0.000000e+00> : vector<1x256xf32>
    %85 = tpu.matmul %84, %79, %cst_66 {dimension_numbers = #tpu.dot_dimension_numbers<[1], [0], [0], [1], [0, 0, 1, 1], [], []>} : vector<1x2xf32>, vector<2x256xf32>, vector<1x256xf32> -> vector<1x256xf32>
    %86 = vector.broadcast %85 : vector<1x256xf32> to vector<16x256xf32>
    %87 = arith.subf %75, %86 : vector<16x256xf32>
    %88 = arith.mulf %87, %87 : vector<16x256xf32>
    %cst_67 = arith.constant dense<0.000000e+00> : vector<16x2xf32>
    %89 = tpu.matmul %88, %78, %cst_67 {dimension_numbers = #tpu.dot_dimension_numbers<[1], [0], [0], [1], [0, 0, 1, 1], [], []>} : vector<16x256xf32>, vector<256x2xf32>, vector<16x2xf32> -> vector<16x2xf32>
    %cst_68 = arith.constant dense<0.000000e+00> : vector<2xf32>
    %90 = vector.multi_reduction <add>, %89, %cst_68 [0] : vector<16x2xf32> to vector<2xf32>
    %91 = vector.shape_cast %90 : vector<2xf32> to vector<1x2xf32>
    %cst_69 = arith.constant 4.8828125E-4 : f32
    %92 = vector.broadcast %cst_69 : f32 to vector<1x2xf32>
    %93 = arith.mulf %91, %92 : vector<1x2xf32>
    %cst_70 = arith.constant 9.99999974E-6 : f32
    %94 = vector.broadcast %cst_70 : f32 to vector<1x2xf32>
    %95 = arith.addf %93, %94 : vector<1x2xf32>
    %96 = math.rsqrt %95 : vector<1x2xf32>
    %cst_71 = arith.constant dense<0.000000e+00> : vector<1x256xf32>
    %97 = tpu.matmul %96, %79, %cst_71 {dimension_numbers = #tpu.dot_dimension_numbers<[1], [0], [0], [1], [0, 0, 1, 1], [], []>} : vector<1x2xf32>, vector<2x256xf32>, vector<1x256xf32> -> vector<1x256xf32>
    %98 = arith.mulf %97, %76 : vector<1x256xf32>
    %99 = vector.broadcast %98 : vector<1x256xf32> to vector<16x256xf32>
    %100 = arith.mulf %87, %99 : vector<16x256xf32>
    %101 = vector.broadcast %77 : vector<1x256xf32> to vector<16x256xf32>
    %102 = arith.addf %100, %101 : vector<16x256xf32>
    %cst_72 = arith.constant 0.000000e+00 : f32
    %103 = vector.broadcast %cst_72 : f32 to vector<16x256xf32>
    %104 = arith.cmpf ogt, %102, %103 : vector<16x256xf32>
    %cst_73 = arith.constant 0.000000e+00 : f32
    %105 = vector.broadcast %cst_73 : f32 to vector<16x256xf32>
    %106 = arith.minimumf %102, %105 : vector<16x256xf32>
    %107 = math.exp %106 : vector<16x256xf32>
    %cst_74 = arith.constant 1.000000e+00 : f32
    %108 = vector.broadcast %cst_74 : f32 to vector<16x256xf32>
    %109 = arith.subf %107, %108 : vector<16x256xf32>
    %110 = arith.select %104, %102, %109 : vector<16x256xi1>, vector<16x256xf32>
    %c0_75 = arith.constant 0 : index
    %c0_76 = arith.constant 0 : index
    %c0_77 = arith.constant 0 : index
    %111 = vector.load %arg12[%c0_75, %c0_76, %c0_77] : memref<1x16x256xf32, #tpu.memory_space<vmem>>, vector<1x16x256xf32>
    %112 = vector.shape_cast %111 : vector<1x16x256xf32> to vector<16x256xf32>
    %113 = vector.shape_cast %110 : vector<16x256xf32> to vector<1x16x256xf32>
    tpu.vector_store %arg12[%c0_75, %c0_76, %c0_77], %113 {strides = array<i32>} : memref<1x16x256xf32, #tpu.memory_space<vmem>>, vector<1x16x256xf32>,
    return
  }
  func.func @transform_0(%arg0: i32) -> (i32, i32, i32) {
    %c0_i32 = arith.constant 0 : i32
    %c0_i32_0 = arith.constant 0 : i32
    %c0_i32_1 = arith.constant 0 : i32
    return %arg0, %c0_i32, %c0_i32_0 : i32, i32, i32
  }
  func.func @transform_1(%arg0: i32) -> (i32, i32, i32) {
    %c0_i32 = arith.constant 0 : i32
    %c0_i32_0 = arith.constant 0 : i32
    %c0_i32_1 = arith.constant 0 : i32
    %c0_i32_2 = arith.constant 0 : i32
    return %c0_i32, %c0_i32_0, %c0_i32_1 : i32, i32, i32
  }
  func.func @transform_2(%arg0: i32) -> (i32, i32) {
    %c0_i32 = arith.constant 0 : i32
    %c0_i32_0 = arith.constant 0 : i32
    %c0_i32_1 = arith.constant 0 : i32
    return %c0_i32, %c0_i32_0 : i32, i32
  }
  func.func @transform_3(%arg0: i32) -> (i32, i32) {
    %c0_i32 = arith.constant 0 : i32
    %c0_i32_0 = arith.constant 0 : i32
    %c0_i32_1 = arith.constant 0 : i32
    return %c0_i32, %c0_i32_0 : i32, i32
  }
  func.func @transform_4(%arg0: i32) -> (i32, i32) {
    %c0_i32 = arith.constant 0 : i32
    %c0_i32_0 = arith.constant 0 : i32
    %c0_i32_1 = arith.constant 0 : i32
    return %c0_i32, %c0_i32_0 : i32, i32
  }
  func.func @transform_5(%arg0: i32) -> (i32, i32, i32) {
    %c0_i32 = arith.constant 0 : i32
    %c0_i32_0 = arith.constant 0 : i32
    %c0_i32_1 = arith.constant 0 : i32
    %c0_i32_2 = arith.constant 0 : i32
    return %c0_i32, %c0_i32_0, %c0_i32_1 : i32, i32, i32
  }
  func.func @transform_6(%arg0: i32) -> (i32, i32) {
    %c0_i32 = arith.constant 0 : i32
    %c0_i32_0 = arith.constant 0 : i32
    %c0_i32_1 = arith.constant 0 : i32
    return %c0_i32, %c0_i32_0 : i32, i32
  }
  func.func @transform_7(%arg0: i32) -> (i32, i32) {
    %c0_i32 = arith.constant 0 : i32
    %c0_i32_0 = arith.constant 0 : i32
    %c0_i32_1 = arith.constant 0 : i32
    return %c0_i32, %c0_i32_0 : i32, i32
  }
  func.func @transform_8(%arg0: i32) -> (i32, i32) {
    %c0_i32 = arith.constant 0 : i32
    %c0_i32_0 = arith.constant 0 : i32
    %c0_i32_1 = arith.constant 0 : i32
    return %c0_i32, %c0_i32_0 : i32, i32
  }
  func.func @transform_9(%arg0: i32) -> (i32, i32) {
    %c0_i32 = arith.constant 0 : i32
    %c0_i32_0 = arith.constant 0 : i32
    %c0_i32_1 = arith.constant 0 : i32
    return %c0_i32, %c0_i32_0 : i32, i32
  }
  func.func @transform_10(%arg0: i32) -> (i32, i32) {
    %c0_i32 = arith.constant 0 : i32
    %c0_i32_0 = arith.constant 0 : i32
    %c0_i32_1 = arith.constant 0 : i32
    return %c0_i32, %c0_i32_0 : i32, i32
  }
  func.func @transform_11(%arg0: i32) -> (i32, i32, i32) {
    %c0_i32 = arith.constant 0 : i32
    %c0_i32_0 = arith.constant 0 : i32
    %c0_i32_1 = arith.constant 0 : i32
    return %arg0, %c0_i32, %c0_i32_0 : i32, i32, i32
  }
}

</mosaic_0001>

<llo_original>
// kernel: double_conv_forward.1
$region0: #{double_conv_forward.1}
  #allocation0 [shape = 'u32[]', space=smem, size = 0x4, offset = 0x4, fixed_abs, tag = 'smem constant byte address 0x4 - core index']
  #allocation1 [shape = 'u32[72,128]{1,0:T(1,128)}', space=vmem, size = 0x9000, scoped, tag = 'internal scratch']
  #allocation2 [shape = 'f32[18,256]{1,0:T(8,128)}', space=vmem, size = 0x6000, scoped, tag = 'scratch operand']
  %s0 = inlined_call_operand.vmem [shape: f32[2,18,128], index: 0, kind: input, shape index: {}]
  %s1 = inlined_call_operand.vmem [shape: f32[3,128,256], index: 1, kind: input, shape index: {}]
  %s2 = inlined_call_operand.vmem [shape: f32[1,256], index: 2, kind: input, shape index: {}]
  %s3 = inlined_call_operand.vmem [shape: f32[1,256], index: 3, kind: input, shape index: {}]
  %s4 = inlined_call_operand.vmem [shape: f32[1,256], index: 4, kind: input, shape index: {}]
  %s5 = inlined_call_operand.vmem [shape: f32[3,256,256], index: 5, kind: input, shape index: {}]
  %s6 = inlined_call_operand.vmem [shape: f32[1,256], index: 6, kind: input, shape index: {}]
  %s7 = inlined_call_operand.vmem [shape: f32[1,256], index: 7, kind: input, shape index: {}]
  %s8 = inlined_call_operand.vmem [shape: f32[1,256], index: 8, kind: input, shape index: {}]
  %s9 = inlined_call_operand.vmem [shape: f32[256,2], index: 9, kind: input, shape index: {}]
  %s10 = inlined_call_operand.vmem [shape: f32[2,256], index: 10, kind: input, shape index: {}]
  %s11 = inlined_call_operand.vmem [shape: f32[2,16,256], index: 11, kind: output, shape index: {}]
  %s12 = sld [smem:[#allocation0]]
  $region77: #{double_conv_forward.1} parent=0
    _
  %s14 = ssub.s32 1, %s12
  %s15 = scalar_select 0, %s14, %s12
  loop: start=0, step=1, limit=4
  $region2: #{double_conv_forward.1} parent=0 // loop_pre_header
    _
  $region3: #{double_conv_forward.1} parent=0 // loop_header
    %s17 = sphi 0, %s21
    %p18 = scmp.ge.s32.totalorder %s17, 4
    %s27 = sphi 0, %s29
    %s30 = sphi 0, %s27
    %s31 = sphi 0, %s30
    %s47 = sphi 0, %s31
    %s51 = sphi 0, %s51
    %s53 = sphi 0, %s51
    %s54 = sphi 0, %s53
    %s68 = sphi 0, %s54
    %s72 = sphi 0, %s72
    %s74 = sphi 0, %s72
    %s75 = sphi 0, %s74
    %s89 = sphi 0, %s75
    %s93 = sphi 0, %s93
    %s95 = sphi 0, %s93
    %s96 = sphi 0, %s95
    %s110 = sphi 0, %s96
    %s114 = sphi 0, %s114
    %s116 = sphi 0, %s114
    %s117 = sphi 0, %s116
    %s131 = sphi 0, %s117
    %s135 = sphi 0, %s135
    %s137 = sphi 0, %s135
    %s138 = sphi 0, %s137
    %s152 = sphi 0, %s138
    %s156 = sphi 0, %s156
    %s158 = sphi 0, %s156
    %s159 = sphi 0, %s158
    %s173 = sphi 0, %s159
    %s177 = sphi 0, %s177
    %s179 = sphi 0, %s177
    %s180 = sphi 0, %s179
    %s194 = sphi 0, %s180
    %s198 = sphi 0, %s198
    %s200 = sphi 0, %s198
    %s201 = sphi 0, %s200
    %s215 = sphi 0, %s201
    %s219 = sphi 0, %s219
    %s221 = sphi 0, %s219
    %s222 = sphi 0, %s221
    %s236 = sphi 0, %s222
    %s240 = sphi 0, %s240
    %s242 = sphi 0, %s240
    %s243 = sphi 0, %s242
    %s257 = sphi 0, %s243
    %s263 = sphi 0, %s265
    %s266 = sphi 0, %s263
    %s267 = sphi 0, %s266
    %s283 = sphi 0, %s267
  $region4: #{double_conv_forward.1} parent=0 // loop_header_branch
    %20 = sbr.rel (%p18) target = $region8
  $region5: #{double_conv_forward.1} parent=0 // loop_body
    %s22 = ssub.s32 %s17, 1
    %s23 = ssub.s32 %s17, 2
    %s24 = sadd.s32 %s17, 1
    %s25 = ssub.s32 %s17, %s24
    %p26 = scmp.eq.s32.totalorder %s25, 0
    %s28 = sadd.s32 %s27, 1
    %s29 = scalar_select %p26, %s27, %s28
    %p32 = pneg %p26
    %p33 = scmp.eq.s32.totalorder %s17, 1
    %p34 = por %p32, %p33
    %p35 = scmp.ne.s32.totalorder %s27, %s30
    %p36 = scmp.eq.s32.totalorder %s17, 0
    %p37 = por %p35, %p36
    %p38 = scmp.ne.s32.totalorder %s27, %s30
    %p39 = scmp.eq.s32.totalorder %s22, 1
    %p40 = por %p38, %p39
    %p41 = scmp.ne.s32.totalorder %s30, %s31
    %p42 = scmp.eq.s32.totalorder %s22, 0
    %p43 = por %p41, %p42
    %p44 = scmp.ne.s32.totalorder %s30, %s31
    %p45 = scmp.eq.s32.totalorder %s23, 1
    %p46 = por %p44, %p45
    %p48 = scmp.ne.s32.totalorder %s31, %s47
    %p49 = scmp.eq.s32.totalorder %s23, 0
    %p50 = por %p48, %p49
    %s52 = sadd.s32 %s51, 1
    %p55 = scmp.eq.s32.totalorder %s17, 1
    %p56 = scmp.ne.s32.totalorder %s51, %s53
    %p57 = scmp.eq.s32.totalorder %s17, 0
    %p58 = por %p56, %p57
    %p59 = scmp.ne.s32.totalorder %s51, %s53
    %p60 = scmp.eq.s32.totalorder %s22, 1
    %p61 = por %p59, %p60
    %p62 = scmp.ne.s32.totalorder %s53, %s54
    %p63 = scmp.eq.s32.totalorder %s22, 0
    %p64 = por %p62, %p63
    %p65 = scmp.ne.s32.totalorder %s53, %s54
    %p66 = scmp.eq.s32.totalorder %s23, 1
    %p67 = por %p65, %p66
    %p69 = scmp.ne.s32.totalorder %s54, %s68
    %p70 = scmp.eq.s32.totalorder %s23, 0
    %p71 = por %p69, %p70
    %s73 = sadd.s32 %s72, 1
    %p76 = scmp.eq.s32.totalorder %s17, 1
    %p77 = scmp.ne.s32.totalorder %s72, %s74
    %p78 = scmp.eq.s32.totalorder %s17, 0
    %p79 = por %p77, %p78
    %p80 = scmp.ne.s32.totalorder %s72, %s74
    %p81 = scmp.eq.s32.totalorder %s22, 1
    %p82 = por %p80, %p81
    %p83 = scmp.ne.s32.totalorder %s74, %s75
    %p84 = scmp.eq.s32.totalorder %s22, 0
    %p85 = por %p83, %p84
    %p86 = scmp.ne.s32.totalorder %s74, %s75
    %p87 = scmp.eq.s32.totalorder %s23, 1
    %p88 = por %p86, %p87
    %p90 = scmp.ne.s32.totalorder %s75, %s89
    %p91 = scmp.eq.s32.totalorder %s23, 0
    %p92 = por %p90, %p91
    %s94 = sadd.s32 %s93, 1
    %p97 = scmp.eq.s32.totalorder %s17, 1
    %p98 = scmp.ne.s32.totalorder %s93, %s95
    %p99 = scmp.eq.s32.totalorder %s17, 0
    %p100 = por %p98, %p99
    %p101 = scmp.ne.s32.totalorder %s93, %s95
    %p102 = scmp.eq.s32.totalorder %s22, 1
    %p103 = por %p101, %p102
    %p104 = scmp.ne.s32.totalorder %s95, %s96
    %p105 = scmp.eq.s32.totalorder %s22, 0
    %p106 = por %p104, %p105
    %p107 = scmp.ne.s32.totalorder %s95, %s96
    %p108 = scmp.eq.s32.totalorder %s23, 1
    %p109 = por %p107, %p108
    %p111 = scmp.ne.s32.totalorder %s96, %s110
    %p112 = scmp.eq.s32.totalorder %s23, 0
    %p113 = por %p111, %p112
    %s115 = sadd.s32 %s114, 1
    %p118 = scmp.eq.s32.totalorder %s17, 1
    %p119 = scmp.ne.s32.totalorder %s114, %s116
    %p120 = scmp.eq.s32.totalorder %s17, 0
    %p121 = por %p119, %p120
    %p122 = scmp.ne.s32.totalorder %s114, %s116
    %p123 = scmp.eq.s32.totalorder %s22, 1
    %p124 = por %p122, %p123
    %p125 = scmp.ne.s32.totalorder %s116, %s117
    %p126 = scmp.eq.s32.totalorder %s22, 0
    %p127 = por %p125, %p126
    %p128 = scmp.ne.s32.totalorder %s116, %s117
    %p129 = scmp.eq.s32.totalorder %s23, 1
    %p130 = por %p128, %p129
    %p132 = scmp.ne.s32.totalorder %s117, %s131
    %p133 = scmp.eq.s32.totalorder %s23, 0
    %p134 = por %p132, %p133
    %s136 = sadd.s32 %s135, 1
    %p139 = scmp.eq.s32.totalorder %s17, 1
    %p140 = scmp.ne.s32.totalorder %s135, %s137
    %p141 = scmp.eq.s32.totalorder %s17, 0
    %p142 = por %p140, %p141
    %p143 = scmp.ne.s32.totalorder %s135, %s137
    %p144 = scmp.eq.s32.totalorder %s22, 1
    %p145 = por %p143, %p144
    %p146 = scmp.ne.s32.totalorder %s137, %s138
    %p147 = scmp.eq.s32.totalorder %s22, 0
    %p148 = por %p146, %p147
    %p149 = scmp.ne.s32.totalorder %s137, %s138
    %p150 = scmp.eq.s32.totalorder %s23, 1
    %p151 = por %p149, %p150
    %p153 = scmp.ne.s32.totalorder %s138, %s152
    %p154 = scmp.eq.s32.totalorder %s23, 0
    %p155 = por %p153, %p154
    %s157 = sadd.s32 %s156, 1
    %p160 = scmp.eq.s32.totalorder %s17, 1
    %p161 = scmp.ne.s32.totalorder %s156, %s158
    %p162 = scmp.eq.s32.totalorder %s17, 0
    %p163 = por %p161, %p162
    %p164 = scmp.ne.s32.totalorder %s156, %s158
    %p165 = scmp.eq.s32.totalorder %s22, 1
    %p166 = por %p164, %p165
    %p167 = scmp.ne.s32.totalorder %s158, %s159
    %p168 = scmp.eq.s32.totalorder %s22, 0
    %p169 = por %p167, %p168
    %p170 = scmp.ne.s32.totalorder %s158, %s159
    %p171 = scmp.eq.s32.totalorder %s23, 1
    %p172 = por %p170, %p171
    %p174 = scmp.ne.s32.totalorder %s159, %s173
    %p175 = scmp.eq.s32.totalorder %s23, 0
    %p176 = por %p174, %p175
    %s178 = sadd.s32 %s177, 1
    %p181 = scmp.eq.s32.totalorder %s17, 1
    %p182 = scmp.ne.s32.totalorder %s177, %s179
    %p183 = scmp.eq.s32.totalorder %s17, 0
    %p184 = por %p182, %p183
    %p185 = scmp.ne.s32.totalorder %s177, %s179
    %p186 = scmp.eq.s32.totalorder %s22, 1
    %p187 = por %p185, %p186
    %p188 = scmp.ne.s32.totalorder %s179, %s180
    %p189 = scmp.eq.s32.totalorder %s22, 0
    %p190 = por %p188, %p189
    %p191 = scmp.ne.s32.totalorder %s179, %s180
    %p192 = scmp.eq.s32.totalorder %s23, 1
    %p193 = por %p191, %p192
    %p195 = scmp.ne.s32.totalorder %s180, %s194
    %p196 = scmp.eq.s32.totalorder %s23, 0
    %p197 = por %p195, %p196
    %s199 = sadd.s32 %s198, 1
    %p202 = scmp.eq.s32.totalorder %s17, 1
    %p203 = scmp.ne.s32.totalorder %s198, %s200
    %p204 = scmp.eq.s32.totalorder %s17, 0
    %p205 = por %p203, %p204
    %p206 = scmp.ne.s32.totalorder %s198, %s200
    %p207 = scmp.eq.s32.totalorder %s22, 1
    %p208 = por %p206, %p207
    %p209 = scmp.ne.s32.totalorder %s200, %s201
    %p210 = scmp.eq.s32.totalorder %s22, 0
    %p211 = por %p209, %p210
    %p212 = scmp.ne.s32.totalorder %s200, %s201
    %p213 = scmp.eq.s32.totalorder %s23, 1
    %p214 = por %p212, %p213
    %p216 = scmp.ne.s32.totalorder %s201, %s215
    %p217 = scmp.eq.s32.totalorder %s23, 0
    %p218 = por %p216, %p217
    %s220 = sadd.s32 %s219, 1
    %p223 = scmp.eq.s32.totalorder %s17, 1
    %p224 = scmp.ne.s32.totalorder %s219, %s221
    %p225 = scmp.eq.s32.totalorder %s17, 0
    %p226 = por %p224, %p225
    %p227 = scmp.ne.s32.totalorder %s219, %s221
    %p228 = scmp.eq.s32.totalorder %s22, 1
    %p229 = por %p227, %p228
    %p230 = scmp.ne.s32.totalorder %s221, %s222
    %p231 = scmp.eq.s32.totalorder %s22, 0
    %p232 = por %p230, %p231
    %p233 = scmp.ne.s32.totalorder %s221, %s222
    %p234 = scmp.eq.s32.totalorder %s23, 1
    %p235 = por %p233, %p234
    %p237 = scmp.ne.s32.totalorder %s222, %s236
    %p238 = scmp.eq.s32.totalorder %s23, 0
    %p239 = por %p237, %p238
    %s241 = sadd.s32 %s240, 1
    %p244 = scmp.eq.s32.totalorder %s17, 1
    %p245 = scmp.ne.s32.totalorder %s240, %s242
    %p246 = scmp.eq.s32.totalorder %s17, 0
    %p247 = por %p245, %p246
    %p248 = scmp.ne.s32.totalorder %s240, %s242
    %p249 = scmp.eq.s32.totalorder %s22, 1
    %p250 = por %p248, %p249
    %p251 = scmp.ne.s32.totalorder %s242, %s243
    %p252 = scmp.eq.s32.totalorder %s22, 0
    %p253 = por %p251, %p252
    %p254 = scmp.ne.s32.totalorder %s242, %s243
    %p255 = scmp.eq.s32.totalorder %s23, 1
    %p256 = por %p254, %p255
    %p258 = scmp.ne.s32.totalorder %s243, %s257
    %p259 = scmp.eq.s32.totalorder %s23, 0
    %p260 = por %p258, %p259
    %s261 = ssub.s32 %s17, %s24
    %p262 = scmp.eq.s32.totalorder %s261, 0
    %s264 = sadd.s32 %s263, 1
    %s265 = scalar_select %p262, %s263, %s264
    %p268 = pneg %p262
    %p269 = scmp.eq.s32.totalorder %s17, 1
    %p270 = por %p268, %p269
    %p271 = scmp.ne.s32.totalorder %s263, %s266
    %p272 = scmp.eq.s32.totalorder %s17, 0
    %p273 = por %p271, %p272
    %p274 = scmp.ne.s32.totalorder %s263, %s266
    %p275 = scmp.eq.s32.totalorder %s22, 1
    %p276 = por %p274, %p275
    %p277 = scmp.ne.s32.totalorder %s266, %s267
    %p278 = scmp.eq.s32.totalorder %s22, 0
    %p279 = por %p277, %p278
    %p280 = scmp.ne.s32.totalorder %s266, %s267
    %p281 = scmp.eq.s32.totalorder %s23, 1
    %p282 = por %p280, %p281
    %p284 = scmp.ne.s32.totalorder %s267, %s283
    %p285 = scmp.eq.s32.totalorder %s23, 0
    %p286 = por %p284, %p285
    %p287 = scmp.le.s32.totalorder 1, %s17
    %p288 = scmp.lt.s32.totalorder %s17, 3
    %p289 = pnand %p287, %p288
    %p290 = pneg %p289
    // Predicated region
    $region9: #{double_conv_forward.1} parent=5 // pred_check
      _
    $region10: #{double_conv_forward.1} parent=5 // pred_check_branch
      %292 = sbr.rel (%p289) target = $region12
    $region11: #{double_conv_forward.1} parent=5 // pred_region
      %s293 = ssub.s32 %s17, 1
      // Predicated region
      $region13: #{double_conv_forward.1} parent=11 // pred_check
        %p294 = pneg %p64
      $region14: #{double_conv_forward.1} parent=11 // pred_check_branch
        %296 = sbr.rel (%p294) target = $region16
      $region15: #{double_conv_forward.1} parent=11 // pred_region
        _
      $region16: #{double_conv_forward.1} parent=11 // pred_fallthru
        _
      // Predicated region
      $region17: #{double_conv_forward.1} parent=11 // pred_check
        %p297 = pneg %p85
      $region18: #{double_conv_forward.1} parent=11 // pred_check_branch
        %299 = sbr.rel (%p297) target = $region20
      $region19: #{double_conv_forward.1} parent=11 // pred_region
        _
      $region20: #{double_conv_forward.1} parent=11 // pred_fallthru
        _
      // Predicated region
      $region21: #{double_conv_forward.1} parent=11 // pred_check
        %p300 = pneg %p106
      $region22: #{double_conv_forward.1} parent=11 // pred_check_branch
        %302 = sbr.rel (%p300) target = $region24
      $region23: #{double_conv_forward.1} parent=11 // pred_region
        _
      $region24: #{double_conv_forward.1} parent=11 // pred_fallthru
        _
      // Predicated region
      $region25: #{double_conv_forward.1} parent=11 // pred_check
        %p303 = pneg %p127
      $region26: #{double_conv_forward.1} parent=11 // pred_check_branch
        %305 = sbr.rel (%p303) target = $region28
      $region27: #{double_conv_forward.1} parent=11 // pred_region
        _
      $region28: #{double_conv_forward.1} parent=11 // pred_fallthru
        _
      // Predicated region
      $region29: #{double_conv_forward.1} parent=11 // pred_check
        %p306 = pneg %p148
      $region30: #{double_conv_forward.1} parent=11 // pred_check_branch
        %308 = sbr.rel (%p306) target = $region32
      $region31: #{double_conv_forward.1} parent=11 // pred_region
        _
      $region32: #{double_conv_forward.1} parent=11 // pred_fallthru
        _
      // Predicated region
      $region33: #{double_conv_forward.1} parent=11 // pred_check
        %p309 = pneg %p169
      $region34: #{double_conv_forward.1} parent=11 // pred_check_branch
        %311 = sbr.rel (%p309) target = $region36
      $region35: #{double_conv_forward.1} parent=11 // pred_region
        _
      $region36: #{double_conv_forward.1} parent=11 // pred_fallthru
        _
      // Predicated region
      $region37: #{double_conv_forward.1} parent=11 // pred_check
        %p312 = pneg %p190
      $region38: #{double_conv_forward.1} parent=11 // pred_check_branch
        %314 = sbr.rel (%p312) target = $region40
      $region39: #{double_conv_forward.1} parent=11 // pred_region
        _
      $region40: #{double_conv_forward.1} parent=11 // pred_fallthru
        _
      // Predicated region
      $region41: #{double_conv_forward.1} parent=11 // pred_check
        %p315 = pneg %p211
      $region42: #{double_conv_forward.1} parent=11 // pred_check_branch
        %317 = sbr.rel (%p315) target = $region44
      $region43: #{double_conv_forward.1} parent=11 // pred_region
        _
      $region44: #{double_conv_forward.1} parent=11 // pred_fallthru
        _
      // Predicated region
      $region45: #{double_conv_forward.1} parent=11 // pred_check
        %p318 = pneg %p232
      $region46: #{double_conv_forward.1} parent=11 // pred_check_branch
        %320 = sbr.rel (%p318) target = $region48
      $region47: #{double_conv_forward.1} parent=11 // pred_region
        _
      $region48: #{double_conv_forward.1} parent=11 // pred_fallthru
        _
      // Predicated region
      $region49: #{double_conv_forward.1} parent=11 // pred_check
        %p321 = pneg %p253
      $region50: #{double_conv_forward.1} parent=11 // pred_check_branch
        %323 = sbr.rel (%p321) target = $region52
      $region51: #{double_conv_forward.1} parent=11 // pred_region
        _
      $region52: #{double_conv_forward.1} parent=11 // pred_fallthru
        _
    $region12: #{double_conv_forward.1} parent=5 // pred_fallthru
      _
    %p324 = scmp.lt.s32.totalorder %s17, 2
    // Predicated region
    $region53: #{double_conv_forward.1} parent=5 // pred_check
      %p325 = pneg %p324
    $region54: #{double_conv_forward.1} parent=5 // pred_check_branch
      %327 = sbr.rel (%p325) target = $region56
    $region55: #{double_conv_forward.1} parent=5 // pred_region
      // Predicated region
      $region57: #{double_conv_forward.1} parent=55 // pred_check
        %p328 = pneg %p37
      $region58: #{double_conv_forward.1} parent=55 // pred_check_branch
        %330 = sbr.rel (%p328) target = $region60
      $region59: #{double_conv_forward.1} parent=55 // pred_region
        %p331 = scmp.lt.s32.totalorder %s17, 1
        %s332 = scalar_select %p331, %s17, 1
        %s333 = smul.addr %s332, 3
        %s334 = smul.addr %s333, 8
        %s335 = scalar_lea.vmem %s0, %s334
      $region60: #{double_conv_forward.1} parent=55 // pred_fallthru
        _
    $region56: #{double_conv_forward.1} parent=5 // pred_fallthru
      _
    %p336 = scmp.le.s32.totalorder 1, %s17
    %p337 = scmp.lt.s32.totalorder %s17, 3
    %p338 = pnand %p336, %p337
    %p339 = pneg %p338
    // Predicated region
    $region61: #{double_conv_forward.1} parent=5 // pred_check
      _
    $region62: #{double_conv_forward.1} parent=5 // pred_check_branch
      %341 = sbr.rel (%p338) target = $region64
    $region63: #{double_conv_forward.1} parent=5 // pred_region
      %s342 = ssub.s32 %s17, 1
      %p343 = scmp.lt.s32.totalorder %s22, 1
      %s344 = scalar_select %p343, %s22, 1
      %s345 = smul.addr %s344, 3
      %s346 = smul.addr %s345, 8
      %s347 = scalar_lea.vmem %s0, %s346
      %p348 = pneg %p43
      %p349 = pneg %p40
      %p350 = pneg %p64
      %p351 = pneg %p61
      %p352 = pneg %p85
      %p353 = pneg %p82
      %p354 = pneg %p106
      %p355 = pneg %p103
      %p356 = pneg %p127
      %p357 = pneg %p124
      %p358 = pneg %p148
      %p359 = pneg %p145
      %p360 = pneg %p169
      %p361 = pneg %p166
      %p362 = pneg %p190
      %p363 = pneg %p187
      %p364 = pneg %p211
      %p365 = pneg %p208
      %p366 = pneg %p232
      %p367 = pneg %p229
      %p368 = pneg %p253
      %p369 = pneg %p250
      %p370 = pneg %p279
      %p371 = pneg %p276
      %p372 = scmp.lt.s32.totalorder %s22, 1
      %s373 = scalar_select %p372, %s22, 1
      %s374 = smul.addr %s373, 4
      %s375 = smul.addr %s374, 8
      %s376 = scalar_lea.vmem %s11, %s375
      %p377 = scmp.lt.s32.totalorder %s22, 1
      %s378 = scalar_select %p377, %s22, 1
      %s379 = smul.addr %s378, 3
      %s380 = smul.addr %s379, 8
      %s381 = scalar_lea.vmem %s0, %s380
      %p382 = scmp.lt.s32.totalorder %s22, 1
      %s383 = scalar_select %p382, %s22, 1
      %s384 = smul.addr %s383, 4
      %s385 = smul.addr %s384, 8
      %s386 = scalar_lea.vmem %s11, %s385
      %v387 = vld [vmem:[%s381] sm:$0xff]
      %v388 = vld [vmem:[%s381 + $0x8] sm:$0xff]
      %v389 = vld [vmem:[%s381 + $0x10] sm:$0x3]
      %v390 = vld [vmem:[%s2] sm:$0x3]
      %v391 = vld [vmem:[%s1] sm:$0xff]
      %v392 = vld [vmem:[%s1 + $0x8] sm:$0xff]
      %v393 = vld [vmem:[%s1 + $0x10] sm:$0xff]
      %v394 = vld [vmem:[%s1 + $0x18] sm:$0xff]
      %v395 = vld [vmem:[%s1 + $0x20] sm:$0xff]
      %v396 = vld [vmem:[%s1 + $0x28] sm:$0xff]
      %v397 = vld [vmem:[%s1 + $0x30] sm:$0xff]
      %v398 = vld [vmem:[%s1 + $0x38] sm:$0xff]
      %v399 = vld [vmem:[%s1 + $0x40] sm:$0xff]
      %v400 = vld [vmem:[%s1 + $0x48] sm:$0xff]
      %v401 = vld [vmem:[%s1 + $0x50] sm:$0xff]
      %v402 = vld [vmem:[%s1 + $0x58] sm:$0xff]
      %v403 = vld [vmem:[%s1 + $0x60] sm:$0xff]
      %v404 = vld [vmem:[%s1 + $0x68] sm:$0xff]
      %v405 = vld [vmem:[%s1 + $0x70] sm:$0xff]
      %v406 = vld [vmem:[%s1 + $0x78] sm:$0xff]
      %v407 = vld [vmem:[%s1 + $0x80] sm:$0xff]
      %v408 = vld [vmem:[%s1 + $0x88] sm:$0xff]
      %v409 = vld [vmem:[%s1 + $0x90] sm:$0xff]
      %v410 = vld [vmem:[%s1 + $0x98] sm:$0xff]
      %v411 = vld [vmem:[%s1 + $0xa0] sm:$0xff]
      %v412 = vld [vmem:[%s1 + $0xa8] sm:$0xff]
      %v413 = vld [vmem:[%s1 + $0xb0] sm:$0xff]
      %v414 = vld [vmem:[%s1 + $0xb8] sm:$0xff]
      %v415 = vld [vmem:[%s1 + $0xc0] sm:$0xff]
      %v416 = vld [vmem:[%s1 + $0xc8] sm:$0xff]
      %v417 = vld [vmem:[%s1 + $0xd0] sm:$0xff]
      %v418 = vld [vmem:[%s1 + $0xd8] sm:$0xff]
      %v419 = vld [vmem:[%s1 + $0xe0] sm:$0xff]
      %v420 = vld [vmem:[%s1 + $0xe8] sm:$0xff]
      %v421 = vld [vmem:[%s1 + $0xf0] sm:$0xff]
      %v422 = vld [vmem:[%s1 + $0xf8] sm:$0xff]
      %s423 = scalar_lea.vmem %s1, 256
      %v424 = vld [vmem:[%s423] sm:$0xff]
      %v425 = vld [vmem:[%s423 + $0x8] sm:$0xff]
      %v426 = vld [vmem:[%s423 + $0x10] sm:$0xff]
      %v427 = vld [vmem:[%s423 + $0x18] sm:$0xff]
      %v428 = vld [vmem:[%s423 + $0x20] sm:$0xff]
      %v429 = vld [vmem:[%s423 + $0x28] sm:$0xff]
      %v430 = vld [vmem:[%s423 + $0x30] sm:$0xff]
      %v431 = vld [vmem:[%s423 + $0x38] sm:$0xff]
      %v432 = vld [vmem:[%s423 + $0x40] sm:$0xff]
      %v433 = vld [vmem:[%s423 + $0x48] sm:$0xff]
      %v434 = vld [vmem:[%s423 + $0x50] sm:$0xff]
      %v435 = vld [vmem:[%s423 + $0x58] sm:$0xff]
      %v436 = vld [vmem:[%s423 + $0x60] sm:$0xff]
      %v437 = vld [vmem:[%s423 + $0x68] sm:$0xff]
      %v438 = vld [vmem:[%s423 + $0x70] sm:$0xff]
      %v439 = vld [vmem:[%s423 + $0x78] sm:$0xff]
      %v440 = vld [vmem:[%s423 + $0x80] sm:$0xff]
      %v441 = vld [vmem:[%s423 + $0x88] sm:$0xff]
      %v442 = vld [vmem:[%s423 + $0x90] sm:$0xff]
      %v443 = vld [vmem:[%s423 + $0x98] sm:$0xff]
      %v444 = vld [vmem:[%s423 + $0xa0] sm:$0xff]
      %v445 = vld [vmem:[%s423 + $0xa8] sm:$0xff]
      %v446 = vld [vmem:[%s423 + $0xb0] sm:$0xff]
      %v447 = vld [vmem:[%s423 + $0xb8] sm:$0xff]
      %v448 = vld [vmem:[%s423 + $0xc0] sm:$0xff]
      %v449 = vld [vmem:[%s423 + $0xc8] sm:$0xff]
      %v450 = vld [vmem:[%s423 + $0xd0] sm:$0xff]
      %v451 = vld [vmem:[%s423 + $0xd8] sm:$0xff]
      %v452 = vld [vmem:[%s423 + $0xe0] sm:$0xff]
      %v453 = vld [vmem:[%s423 + $0xe8] sm:$0xff]
      %v454 = vld [vmem:[%s423 + $0xf0] sm:$0xff]
      %v455 = vld [vmem:[%s423 + $0xf8] sm:$0xff]
      %vm459 = vcmask 1046528
      %v460 = vrot.slane %v387, 1
      %v461 = vrot.slane %v388, 1
      %v462 = vsel %vm459, %v460, %v461
      %v463 = vrot.slane %v389, 1
      %v464 = vsel %vm459, %v461, %v463
      %467 = vmatpush.msra.mxu0 %v454
      %468 = vmatpush.msra.mxu0 %v452
      %469 = vmatpush.msra.mxu0 %v450
      %470 = vmatpush.msra.mxu0 %v448
      %471 = vmatpush.msra.mxu0 %v446
      %472 = vmatpush.msra.mxu0 %v444
      %473 = vmatpush.msra.mxu0 %v442
      %474 = vmatpush.msra.mxu0 %v440
      %475 = vmatpush.msra.mxu0 %v438
      %476 = vmatpush.msra.mxu0 %v436
      %477 = vmatpush.msra.mxu0 %v434
      %478 = vmatpush.msra.mxu0 %v432
      %479 = vmatpush.msra.mxu0 %v430
      %480 = vmatpush.msra.mxu0 %v428
      %481 = vmatpush.msra.mxu0 %v426
      %482 = vmatpush.msra.mxu0 %v424
      %483 = vmatmul.f32.gmra.mxu0 %v462
      %v484 = vpop.f32.mrf.mxu0
      %v485 = vadd.f32 0.0, %v484
      %486 = vmatmul.f32.gmra.mxu0 %v464
      %v487 = vpop.f32.mrf.mxu0
      %v488 = vadd.f32 0.0, %v487
      %489 = vdwg.mxu0
      %490 = vmatpush.msra.mxu0 %v455
      %491 = vmatpush.msra.mxu0 %v453
      %492 = vmatpush.msra.mxu0 %v451
      %493 = vmatpush.msra.mxu0 %v449
      %494 = vmatpush.msra.mxu0 %v447
      %495 = vmatpush.msra.mxu0 %v445
      %496 = vmatpush.msra.mxu0 %v443
      %497 = vmatpush.msra.mxu0 %v441
      %498 = vmatpush.msra.mxu0 %v439
      %499 = vmatpush.msra.mxu0 %v437
      %500 = vmatpush.msra.mxu0 %v435
      %501 = vmatpush.msra.mxu0 %v433
      %502 = vmatpush.msra.mxu0 %v431
      %503 = vmatpush.msra.mxu0 %v429
      %504 = vmatpush.msra.mxu0 %v427
      %505 = vmatpush.msra.mxu0 %v425
      %506 = vmatmul.f32.gmra.mxu0 %v462
      %v507 = vpop.f32.mrf.mxu0
      %v508 = vadd.f32 0.0, %v507
      %509 = vmatmul.f32.gmra.mxu0 %v464
      %v510 = vpop.f32.mrf.mxu0
      %v511 = vadd.f32 0.0, %v510
      %512 = vdwg.mxu0
      %513 = vmatpush.msra.mxu0 %v421
      %514 = vmatpush.msra.mxu0 %v419
      %515 = vmatpush.msra.mxu0 %v417
      %516 = vmatpush.msra.mxu0 %v415
      %517 = vmatpush.msra.mxu0 %v413
      %518 = vmatpush.msra.mxu0 %v411
      %519 = vmatpush.msra.mxu0 %v409
      %520 = vmatpush.msra.mxu0 %v407
      %521 = vmatpush.msra.mxu0 %v405
      %522 = vmatpush.msra.mxu0 %v403
      %523 = vmatpush.msra.mxu0 %v401
      %524 = vmatpush.msra.mxu0 %v399
      %525 = vmatpush.msra.mxu0 %v397
      %526 = vmatpush.msra.mxu0 %v395
      %527 = vmatpush.msra.mxu0 %v393
      %528 = vmatpush.msra.mxu0 %v391
      %529 = vmatmul.f32.gmra.mxu0 %v387
      %v530 = vpop.f32.mrf.mxu0
      %v531 = vadd.f32 %v485, %v530
      %532 = vmatmul.f32.gmra.mxu0 %v388
      %v533 = vpop.f32.mrf.mxu0
      %v534 = vadd.f32 %v488, %v533
      %535 = vdwg.mxu0
      %536 = vmatpush.msra.mxu0 %v422
      %537 = vmatpush.msra.mxu0 %v420
      %538 = vmatpush.msra.mxu0 %v418
      %539 = vmatpush.msra.mxu0 %v416
      %540 = vmatpush.msra.mxu0 %v414
      %541 = vmatpush.msra.mxu0 %v412
      %542 = vmatpush.msra.mxu0 %v410
      %543 = vmatpush.msra.mxu0 %v408
      %544 = vmatpush.msra.mxu0 %v406
      %545 = vmatpush.msra.mxu0 %v404
      %546 = vmatpush.msra.mxu0 %v402
      %547 = vmatpush.msra.mxu0 %v400
      %548 = vmatpush.msra.mxu0 %v398
      %549 = vmatpush.msra.mxu0 %v396
      %550 = vmatpush.msra.mxu0 %v394
      %551 = vmatpush.msra.mxu0 %v392
      %552 = vmatmul.f32.gmra.mxu0 %v387
      %v553 = vpop.f32.mrf.mxu0
      %v554 = vadd.f32 %v508, %v553
      %555 = vmatmul.f32.gmra.mxu0 %v388
      %v556 = vpop.f32.mrf.mxu0
      %v557 = vadd.f32 %v511, %v556
      %558 = vdwg.mxu0
      %s559 = scalar_lea.vmem %s1, 512
      %v560 = vld [vmem:[%s559] sm:$0xff]
      %v561 = vld [vmem:[%s559 + $0x8] sm:$0xff]
      %v562 = vld [vmem:[%s559 + $0x10] sm:$0xff]
      %v563 = vld [vmem:[%s559 + $0x18] sm:$0xff]
      %v564 = vld [vmem:[%s559 + $0x20] sm:$0xff]
      %v565 = vld [vmem:[%s559 + $0x28] sm:$0xff]
      %v566 = vld [vmem:[%s559 + $0x30] sm:$0xff]
      %v567 = vld [vmem:[%s559 + $0x38] sm:$0xff]
      %v568 = vld [vmem:[%s559 + $0x40] sm:$0xff]
      %v569 = vld [vmem:[%s559 + $0x48] sm:$0xff]
      %v570 = vld [vmem:[%s559 + $0x50] sm:$0xff]
      %v571 = vld [vmem:[%s559 + $0x58] sm:$0xff]
      %v572 = vld [vmem:[%s559 + $0x60] sm:$0xff]
      %v573 = vld [vmem:[%s559 + $0x68] sm:$0xff]
      %v574 = vld [vmem:[%s559 + $0x70] sm:$0xff]
      %v575 = vld [vmem:[%s559 + $0x78] sm:$0xff]
      %v576 = vld [vmem:[%s559 + $0x80] sm:$0xff]
      %v577 = vld [vmem:[%s559 + $0x88] sm:$0xff]
      %v578 = vld [vmem:[%s559 + $0x90] sm:$0xff]
      %v579 = vld [vmem:[%s559 + $0x98] sm:$0xff]
      %v580 = vld [vmem:[%s559 + $0xa0] sm:$0xff]
      %v581 = vld [vmem:[%s559 + $0xa8] sm:$0xff]
      %v582 = vld [vmem:[%s559 + $0xb0] sm:$0xff]
      %v583 = vld [vmem:[%s559 + $0xb8] sm:$0xff]
      %v584 = vld [vmem:[%s559 + $0xc0] sm:$0xff]
      %v585 = vld [vmem:[%s559 + $0xc8] sm:$0xff]
      %v586 = vld [vmem:[%s559 + $0xd0] sm:$0xff]
      %v587 = vld [vmem:[%s559 + $0xd8] sm:$0xff]
      %v588 = vld [vmem:[%s559 + $0xe0] sm:$0xff]
      %v589 = vld [vmem:[%s559 + $0xe8] sm:$0xff]
      %v590 = vld [vmem:[%s559 + $0xf0] sm:$0xff]
      %v591 = vld [vmem:[%s559 + $0xf8] sm:$0xff]
      %vm592 = vcmask 1045504
      %v593 = vrot.slane %v387, 2
      %v594 = vrot.slane %v388, 2
      %v595 = vsel %vm592, %v593, %v594
      %v596 = vrot.slane %v389, 2
      %v597 = vsel %vm592, %v594, %v596
      %600 = vmatpush.msra.mxu0 %v590
      %601 = vmatpush.msra.mxu0 %v588
      %602 = vmatpush.msra.mxu0 %v586
      %603 = vmatpush.msra.mxu0 %v584
      %604 = vmatpush.msra.mxu0 %v582
      %605 = vmatpush.msra.mxu0 %v580
      %606 = vmatpush.msra.mxu0 %v578
      %607 = vmatpush.msra.mxu0 %v576
      %608 = vmatpush.msra.mxu0 %v574
      %609 = vmatpush.msra.mxu0 %v572
      %610 = vmatpush.msra.mxu0 %v570
      %611 = vmatpush.msra.mxu0 %v568
      %612 = vmatpush.msra.mxu0 %v566
      %613 = vmatpush.msra.mxu0 %v564
      %614 = vmatpush.msra.mxu0 %v562
      %615 = vmatpush.msra.mxu0 %v560
      %616 = vmatmul.f32.gmra.mxu0 %v595
      %v617 = vpop.f32.mrf.mxu0
      %v618 = vadd.f32 0.0, %v617
      %619 = vmatmul.f32.gmra.mxu0 %v597
      %v620 = vpop.f32.mrf.mxu0
      %v621 = vadd.f32 0.0, %v620
      %622 = vdwg.mxu0
      %623 = vmatpush.msra.mxu0 %v591
      %624 = vmatpush.msra.mxu0 %v589
      %625 = vmatpush.msra.mxu0 %v587
      %626 = vmatpush.msra.mxu0 %v585
      %627 = vmatpush.msra.mxu0 %v583
      %628 = vmatpush.msra.mxu0 %v581
      %629 = vmatpush.msra.mxu0 %v579
      %630 = vmatpush.msra.mxu0 %v577
      %631 = vmatpush.msra.mxu0 %v575
      %632 = vmatpush.msra.mxu0 %v573
      %633 = vmatpush.msra.mxu0 %v571
      %634 = vmatpush.msra.mxu0 %v569
      %635 = vmatpush.msra.mxu0 %v567
      %636 = vmatpush.msra.mxu0 %v565
      %637 = vmatpush.msra.mxu0 %v563
      %638 = vmatpush.msra.mxu0 %v561
      %639 = vmatmul.f32.gmra.mxu0 %v595
      %v640 = vpop.f32.mrf.mxu0
      %v641 = vadd.f32 0.0, %v640
      %642 = vmatmul.f32.gmra.mxu0 %v597
      %v643 = vpop.f32.mrf.mxu0
      %v644 = vadd.f32 0.0, %v643
      %645 = vdwg.mxu0
      %v646 = vadd.f32 %v531, %v618
      %v647 = vadd.f32 %v554, %v641
      %v648 = vadd.f32 %v534, %v621
      %v649 = vadd.f32 %v557, %v644
      %v651 = vperm.slane %v390, 0
      %v652 = vperm.slane %v390, 1
      %v655 = vadd.f32 %v646, %v651
      %v656 = vadd.f32 %v647, %v652
      %v657 = vadd.f32 %v648, %v651
      %v658 = vadd.f32 %v649, %v652
      %v659 = vld [vmem:[%s3] sm:$0x3]
      %v660 = vld [vmem:[%s4] sm:$0x3]
      %v661 = vld [vmem:[%s9] sm:$0xff]
      %v662 = vld [vmem:[%s9 + $0x8] sm:$0xff]
      %v663 = vld [vmem:[%s9 + $0x10] sm:$0xff]
      %v664 = vld [vmem:[%s9 + $0x18] sm:$0xff]
      %v665 = vld [vmem:[%s9 + $0x20] sm:$0xff]
      %v666 = vld [vmem:[%s9 + $0x28] sm:$0xff]
      %v667 = vld [vmem:[%s9 + $0x30] sm:$0xff]
      %v668 = vld [vmem:[%s9 + $0x38] sm:$0xff]
      %v669 = vld [vmem:[%s9 + $0x40] sm:$0xff]
      %v670 = vld [vmem:[%s9 + $0x48] sm:$0xff]
      %v671 = vld [vmem:[%s9 + $0x50] sm:$0xff]
      %v672 = vld [vmem:[%s9 + $0x58] sm:$0xff]
      %v673 = vld [vmem:[%s9 + $0x60] sm:$0xff]
      %v674 = vld [vmem:[%s9 + $0x68] sm:$0xff]
      %v675 = vld [vmem:[%s9 + $0x70] sm:$0xff]
      %v676 = vld [vmem:[%s9 + $0x78] sm:$0xff]
      %v677 = vld [vmem:[%s9 + $0x80] sm:$0xff]
      %v678 = vld [vmem:[%s9 + $0x88] sm:$0xff]
      %v679 = vld [vmem:[%s9 + $0x90] sm:$0xff]
      %v680 = vld [vmem:[%s9 + $0x98] sm:$0xff]
      %v681 = vld [vmem:[%s9 + $0xa0] sm:$0xff]
      %v682 = vld [vmem:[%s9 + $0xa8] sm:$0xff]
      %v683 = vld [vmem:[%s9 + $0xb0] sm:$0xff]
      %v684 = vld [vmem:[%s9 + $0xb8] sm:$0xff]
      %v685 = vld [vmem:[%s9 + $0xc0] sm:$0xff]
      %v686 = vld [vmem:[%s9 + $0xc8] sm:$0xff]
      %v687 = vld [vmem:[%s9 + $0xd0] sm:$0xff]
      %v688 = vld [vmem:[%s9 + $0xd8] sm:$0xff]
      %v689 = vld [vmem:[%s9 + $0xe0] sm:$0xff]
      %v690 = vld [vmem:[%s9 + $0xe8] sm:$0xff]
      %v691 = vld [vmem:[%s9 + $0xf0] sm:$0xff]
      %v692 = vld [vmem:[%s9 + $0xf8] sm:$0xff]
      %v693 = vld [vmem:[%s10] sm:$0xf]
      %694 = vmatpush.msra.mxu0 %v676
      %695 = vmatpush.msra.mxu0 %v675
      %696 = vmatpush.msra.mxu0 %v674
      %697 = vmatpush.msra.mxu0 %v673
      %698 = vmatpush.msra.mxu0 %v672
      %699 = vmatpush.msra.mxu0 %v671
      %700 = vmatpush.msra.mxu0 %v670
      %701 = vmatpush.msra.mxu0 %v669
      %702 = vmatpush.msra.mxu0 %v668
      %703 = vmatpush.msra.mxu0 %v667
      %704 = vmatpush.msra.mxu0 %v666
      %705 = vmatpush.msra.mxu0 %v665
      %706 = vmatpush.msra.mxu0 %v664
      %707 = vmatpush.msra.mxu0 %v663
      %708 = vmatpush.msra.mxu0 %v662
      %709 = vmatpush.msra.mxu0 %v661
      %710 = vmatmul.f32.gmra.mxu0 %v655
      %v711 = vpop.f32.mrf.mxu0
      %v712 = vadd.f32 0.0, %v711
      %713 = vmatmul.f32.gmra.mxu0 %v657
      %v714 = vpop.f32.mrf.mxu0
      %v715 = vadd.f32 0.0, %v714
      %716 = vdwg.mxu0
      %717 = vmatpush.msra.mxu0 %v692
      %718 = vmatpush.msra.mxu0 %v691
      %719 = vmatpush.msra.mxu0 %v690
      %720 = vmatpush.msra.mxu0 %v689
      %721 = vmatpush.msra.mxu0 %v688
      %722 = vmatpush.msra.mxu0 %v687
      %723 = vmatpush.msra.mxu0 %v686
      %724 = vmatpush.msra.mxu0 %v685
      %725 = vmatpush.msra.mxu0 %v684
      %726 = vmatpush.msra.mxu0 %v683
      %727 = vmatpush.msra.mxu0 %v682
      %728 = vmatpush.msra.mxu0 %v681
      %729 = vmatpush.msra.mxu0 %v680
      %730 = vmatpush.msra.mxu0 %v679
      %731 = vmatpush.msra.mxu0 %v678
      %732 = vmatpush.msra.mxu0 %v677
      %733 = vmatmul.f32.gmra.mxu0 %v656
      %v734 = vpop.f32.mrf.mxu0
      %v735 = vadd.f32 %v712, %v734
      %736 = vmatmul.f32.gmra.mxu0 %v658
      %v737 = vpop.f32.mrf.mxu0
      %v738 = vadd.f32 %v715, %v737
      %739 = vdwg.mxu0
      %vm740 = vcmask 15360
      %v741 = vsel %vm740, %v735, 0.0
      %v742 = vsel %vm740, %v738, 0.0
      %v743 = vadd.f32 %v741, %v742
      %v744 = vrot.slane %v743, 4
      %v745 = vadd.f32 %v743, %v744
      %v746 = vrot.slane %v745, 2
      %v747 = vadd.f32 %v745, %v746
      %v748 = vrot.slane %v747, 1
      %v749 = vadd.f32 %v747, %v748
      %v750 = vmul.f32 %v749, 0.00048828125
      %752 = vst [vmem:[#allocation1] ss:$4 sm:$0xff] %v693
      %v753 = vld.sshfl [vmem:[#allocation1] sm:$0xff pattern:$0x73625140]
      %v754 = vld.sshfl [vmem:[#allocation1 + $0x8] sm:$0xff pattern:$0x73625140]
      %v756 = vsel %vm740, %v750, 0
      %vm758 = vcmask 1041408
      %v759 = vsel %vm758, %v753, 0
      %v761 = vsel %vm758, %v754, 0
      %763 = vmatpush.msra.mxu0 0.0
      %764 = vmatpush.msra.mxu0 0.0
      %765 = vmatpush.msra.mxu0 0.0
      %766 = vmatpush.msra.mxu0 0.0
      %767 = vmatpush.msra.mxu0 0.0
      %768 = vmatpush.msra.mxu0 0.0
      %769 = vmatpush.msra.mxu0 0.0
      %770 = vmatpush.msra.mxu0 0.0
      %771 = vmatpush.msra.mxu0 0.0
      %772 = vmatpush.msra.mxu0 0.0
      %773 = vmatpush.msra.mxu0 0.0
      %774 = vmatpush.msra.mxu0 0.0
      %775 = vmatpush.msra.mxu0 0.0
      %776 = vmatpush.msra.mxu0 0.0
      %777 = vmatpush.msra.mxu0 0.0
      %778 = vmatpush.msra.mxu0 %v759
      %779 = vmatmul.f32.gmra.mxu0 %v756
      %v780 = vpop.f32.mrf.mxu0
      %v781 = vadd.f32 0.0, %v780
      %782 = vdwg.mxu0
      %783 = vmatpush.msra.mxu0 0.0
      %784 = vmatpush.msra.mxu0 0.0
      %785 = vmatpush.msra.mxu0 0.0
      %786 = vmatpush.msra.mxu0 0.0
      %787 = vmatpush.msra.mxu0 0.0
      %788 = vmatpush.msra.mxu0 0.0
      %789 = vmatpush.msra.mxu0 0.0
      %790 = vmatpush.msra.mxu0 0.0
      %791 = vmatpush.msra.mxu0 0.0
      %792 = vmatpush.msra.mxu0 0.0
      %793 = vmatpush.msra.mxu0 0.0
      %794 = vmatpush.msra.mxu0 0.0
      %795 = vmatpush.msra.mxu0 0.0
      %796 = vmatpush.msra.mxu0 0.0
      %797 = vmatpush.msra.mxu0 0.0
      %798 = vmatpush.msra.mxu0 %v761
      %799 = vmatmul.f32.gmra.mxu0 %v756
      %v800 = vpop.f32.mrf.mxu0
      %v801 = vadd.f32 0.0, %v800
      %802 = vdwg.mxu0
      %v803 = vperm.slane %v781, 0
      %v804 = vperm.slane %v801, 0
      %v805 = vsub.f32 %v655, %v803
      %v806 = vsub.f32 %v656, %v804
      %v807 = vsub.f32 %v657, %v803
      %v808 = vsub.f32 %v658, %v804
      %v809 = vmul.f32 %v805, %v805
      %v810 = vmul.f32 %v806, %v806
      %v811 = vmul.f32 %v807, %v807
      %v812 = vmul.f32 %v808, %v808
      %813 = vmatpush.msra.mxu0 %v676
      %814 = vmatpush.msra.mxu0 %v675
      %815 = vmatpush.msra.mxu0 %v674
      %816 = vmatpush.msra.mxu0 %v673
      %817 = vmatpush.msra.mxu0 %v672
      %818 = vmatpush.msra.mxu0 %v671
      %819 = vmatpush.msra.mxu0 %v670
      %820 = vmatpush.msra.mxu0 %v669
      %821 = vmatpush.msra.mxu0 %v668
      %822 = vmatpush.msra.mxu0 %v667
      %823 = vmatpush.msra.mxu0 %v666
      %824 = vmatpush.msra.mxu0 %v665
      %825 = vmatpush.msra.mxu0 %v664
      %826 = vmatpush.msra.mxu0 %v663
      %827 = vmatpush.msra.mxu0 %v662
      %828 = vmatpush.msra.mxu0 %v661
      %829 = vmatmul.f32.gmra.mxu0 %v809
      %v830 = vpop.f32.mrf.mxu0
      %v831 = vadd.f32 0.0, %v830
      %832 = vmatmul.f32.gmra.mxu0 %v811
      %v833 = vpop.f32.mrf.mxu0
      %v834 = vadd.f32 0.0, %v833
      %835 = vdwg.mxu0
      %836 = vmatpush.msra.mxu0 %v692
      %837 = vmatpush.msra.mxu0 %v691
      %838 = vmatpush.msra.mxu0 %v690
      %839 = vmatpush.msra.mxu0 %v689
      %840 = vmatpush.msra.mxu0 %v688
      %841 = vmatpush.msra.mxu0 %v687
      %842 = vmatpush.msra.mxu0 %v686
      %843 = vmatpush.msra.mxu0 %v685
      %844 = vmatpush.msra.mxu0 %v684
      %845 = vmatpush.msra.mxu0 %v683
      %846 = vmatpush.msra.mxu0 %v682
      %847 = vmatpush.msra.mxu0 %v681
      %848 = vmatpush.msra.mxu0 %v680
      %849 = vmatpush.msra.mxu0 %v679
      %850 = vmatpush.msra.mxu0 %v678
      %851 = vmatpush.msra.mxu0 %v677
      %852 = vmatmul.f32.gmra.mxu0 %v810
      %v853 = vpop.f32.mrf.mxu0
      %v854 = vadd.f32 %v831, %v853
      %855 = vmatmul.f32.gmra.mxu0 %v812
      %v856 = vpop.f32.mrf.mxu0
      %v857 = vadd.f32 %v834, %v856
      %858 = vdwg.mxu0
      %v859 = vsel %vm740, %v854, 0.0
      %v860 = vsel %vm740, %v857, 0.0
      %v861 = vadd.f32 %v859, %v860
      %v862 = vrot.slane %v861, 4
      %v863 = vadd.f32 %v861, %v862
      %v864 = vrot.slane %v863, 2
      %v865 = vadd.f32 %v863, %v864
      %v866 = vrot.slane %v865, 1
      %v867 = vadd.f32 %v865, %v866
      %v868 = vmul.f32 %v867, 0.00048828125
      %v869 = vadd.f32 %v868, 1e-05
      %v870 = vrsqrt.pop %v869
      %v871 = vmul.f32 %v870, %v869
      %v872 = vmul.f32 %v871, %v870
      %v873 = vmul.f32 0.5, %v872
      %v874 = vsub.f32 1.5, %v873
      %v875 = vmul.f32 %v870, %v874
      %vm876 = vweird.f32 %v869
      %vm877 = vweird.f32 %v870
      %vm878 = vmor %vm876, %vm877
      %v879 = vsel %vm878, %v870, %v875
      %880 = vst [vmem:[#allocation1] ss:$4 sm:$0xff] %v693
      %v881 = vld.sshfl [vmem:[#allocation1] sm:$0xff pattern:$0x73625140]
      %v882 = vld.sshfl [vmem:[#allocation1 + $0x8] sm:$0xff pattern:$0x73625140]
      %v884 = vsel %vm740, %v879, 0
      %v886 = vsel %vm758, %v881, 0
      %v888 = vsel %vm758, %v882, 0
      %890 = vmatpush.msra.mxu0 0.0
      %891 = vmatpush.msra.mxu0 0.0
      %892 = vmatpush.msra.mxu0 0.0
      %893 = vmatpush.msra.mxu0 0.0
      %894 = vmatpush.msra.mxu0 0.0
      %895 = vmatpush.msra.mxu0 0.0
      %896 = vmatpush.msra.mxu0 0.0
      %897 = vmatpush.msra.mxu0 0.0
      %898 = vmatpush.msra.mxu0 0.0
      %899 = vmatpush.msra.mxu0 0.0
      %900 = vmatpush.msra.mxu0 0.0
      %901 = vmatpush.msra.mxu0 0.0
      %902 = vmatpush.msra.mxu0 0.0
      %903 = vmatpush.msra.mxu0 0.0
      %904 = vmatpush.msra.mxu0 0.0
      %905 = vmatpush.msra.mxu0 %v886
      %906 = vmatmul.f32.gmra.mxu0 %v884
      %v907 = vpop.f32.mrf.mxu0
      %v908 = vadd.f32 0.0, %v907
      %909 = vdwg.mxu0
      %910 = vmatpush.msra.mxu0 0.0
      %911 = vmatpush.msra.mxu0 0.0
      %912 = vmatpush.msra.mxu0 0.0
      %913 = vmatpush.msra.mxu0 0.0
      %914 = vmatpush.msra.mxu0 0.0
      %915 = vmatpush.msra.mxu0 0.0
      %916 = vmatpush.msra.mxu0 0.0
      %917 = vmatpush.msra.mxu0 0.0
      %918 = vmatpush.msra.mxu0 0.0
      %919 = vmatpush.msra.mxu0 0.0
      %920 = vmatpush.msra.mxu0 0.0
      %921 = vmatpush.msra.mxu0 0.0
      %922 = vmatpush.msra.mxu0 0.0
      %923 = vmatpush.msra.mxu0 0.0
      %924 = vmatpush.msra.mxu0 0.0
      %925 = vmatpush.msra.mxu0 %v888
      %926 = vmatmul.f32.gmra.mxu0 %v884
      %v927 = vpop.f32.mrf.mxu0
      %v928 = vadd.f32 0.0, %v927
      %929 = vdwg.mxu0
      %v931 = vperm.slane %v659, 0
      %v932 = vperm.slane %v659, 1
      %v935 = vmul.f32 %v908, %v931
      %v936 = vmul.f32 %v928, %v932
      %v937 = vperm.slane %v935, 0
      %v938 = vperm.slane %v936, 0
      %v939 = vmul.f32 %v805, %v937
      %v940 = vmul.f32 %v806, %v938
      %v941 = vmul.f32 %v807, %v937
      %v942 = vmul.f32 %v808, %v938
      %v944 = vperm.slane %v660, 0
      %v945 = vperm.slane %v660, 1
      %v948 = vadd.f32 %v939, %v944
      %v949 = vadd.f32 %v940, %v945
      %v950 = vadd.f32 %v941, %v944
      %v951 = vadd.f32 %v942, %v945
      %vm952 = vcmp.gt.f32.partialorder %v948, 0.0
      %vm953 = vcmp.gt.f32.partialorder %v949, 0.0
      %vm954 = vcmp.gt.f32.partialorder %v950, 0.0
      %vm955 = vcmp.gt.f32.partialorder %v951, 0.0
      %v956 = vmin.f32 %v948, 0.0
      %v957 = vmin.f32 %v949, 0.0
      %v958 = vmin.f32 %v950, 0.0
      %v959 = vmin.f32 %v951, 0.0
      %v960 = vmul.f32 %v956, 1.442695
      %v961 = vpow.pop %v960
      %v962 = vmul.f32 %v957, 1.442695
      %v963 = vpow.pop %v962
      %v964 = vmul.f32 %v958, 1.442695
      %v965 = vpow.pop %v964
      %v966 = vmul.f32 %v959, 1.442695
      %v967 = vpow.pop %v966
      %v968 = vsub.f32 %v961, 1.0
      %v969 = vsub.f32 %v963, 1.0
      %v970 = vsub.f32 %v965, 1.0
      %v971 = vsub.f32 %v967, 1.0
      %v972 = vsel %vm952, %v948, %v968
      %v973 = vsel %vm953, %v949, %v969
      %v974 = vsel %vm954, %v950, %v970
      %v975 = vsel %vm955, %v951, %v971
      %v976 = vlaneseq
      %vm977 = vcmp.ge.s32.totalorder %v976, 0
      %vm978 = vcmp.lt.s32.totalorder %v976, 256
      %vm979 = vmand %vm977, %vm978
      %980 = vst.msk [vmem:[#allocation2] ss:$8 sm:$0x3] %vm979, 0.0
      %981 = vst.msk [vmem:[#allocation2] ss:$8 sm:$0x0] %vm979, 0.0
      %s982 = scalar_lea.vmem [#allocation2], 33
      %983 = vst.msk [vmem:[%s982] ss:$8 sm:$0x3] %vm979, 0.0
      %984 = vst.msk [vmem:[%s982] ss:$8 sm:$0x0] %vm979, 0.0
      %vm989 = vcmask 1040384
      %v990 = vrot.slane %v972, 7
      %v991 = vrot.slane %v973, 7
      %v992 = vrot.slane %v974, 7
      %v993 = vsel %vm989, %v990, %v992
      %v994 = vrot.slane %v975, 7
      %v995 = vsel %vm989, %v991, %v994
      %1002 = vst [vmem:[#allocation2] sm:$0xfe] %v990
      %1003 = vst [vmem:[#allocation2 + $0x8] sm:$0xfe] %v991
      %1004 = vst [vmem:[#allocation2 + $0x10] sm:$0xff] %v993
      %1005 = vst [vmem:[#allocation2 + $0x18] sm:$0xff] %v995
      %1006 = vst [vmem:[#allocation2 + $0x20] sm:$0x1] %v992
      %1007 = vst [vmem:[#allocation2 + $0x28] sm:$0x1] %v994
      %v1008 = vld [vmem:[#allocation2] sm:$0xff]
      %v1009 = vld [vmem:[#allocation2 + $0x8] sm:$0xff]
      %v1010 = vld [vmem:[#allocation2 + $0x10] sm:$0xff]
      %v1011 = vld [vmem:[#allocation2 + $0x18] sm:$0xff]
      %v1012 = vld [vmem:[#allocation2 + $0x20] sm:$0x3]
      %v1013 = vld [vmem:[#allocation2 + $0x28] sm:$0x3]
      %v1014 = vld [vmem:[%s6] sm:$0x3]
      %v1015 = vld [vmem:[%s5] sm:$0xff]
      %v1016 = vld [vmem:[%s5 + $0x8] sm:$0xff]
      %v1017 = vld [vmem:[%s5 + $0x10] sm:$0xff]
      %v1018 = vld [vmem:[%s5 + $0x18] sm:$0xff]
      %v1019 = vld [vmem:[%s5 + $0x20] sm:$0xff]
      %v1020 = vld [vmem:[%s5 + $0x28] sm:$0xff]
      %v1021 = vld [vmem:[%s5 + $0x30] sm:$0xff]
      %v1022 = vld [vmem:[%s5 + $0x38] sm:$0xff]
      %v1023 = vld [vmem:[%s5 + $0x40] sm:$0xff]
      %v1024 = vld [vmem:[%s5 + $0x48] sm:$0xff]
      %v1025 = vld [vmem:[%s5 + $0x50] sm:$0xff]
      %v1026 = vld [vmem:[%s5 + $0x58] sm:$0xff]
      %v1027 = vld [vmem:[%s5 + $0x60] sm:$0xff]
      %v1028 = vld [vmem:[%s5 + $0x68] sm:$0xff]
      %v1029 = vld [vmem:[%s5 + $0x70] sm:$0xff]
      %v1030 = vld [vmem:[%s5 + $0x78] sm:$0xff]
      %v1031 = vld [vmem:[%s5 + $0x80] sm:$0xff]
      %v1032 = vld [vmem:[%s5 + $0x88] sm:$0xff]
      %v1033 = vld [vmem:[%s5 + $0x90] sm:$0xff]
      %v1034 = vld [vmem:[%s5 + $0x98] sm:$0xff]
      %v1035 = vld [vmem:[%s5 + $0xa0] sm:$0xff]
      %v1036 = vld [vmem:[%s5 + $0xa8] sm:$0xff]
      %v1037 = vld [vmem:[%s5 + $0xb0] sm:$0xff]
      %v1038 = vld [vmem:[%s5 + $0xb8] sm:$0xff]
      %v1039 = vld [vmem:[%s5 + $0xc0] sm:$0xff]
      %v1040 = vld [vmem:[%s5 + $0xc8] sm:$0xff]
      %v1041 = vld [vmem:[%s5 + $0xd0] sm:$0xff]
      %v1042 = vld [vmem:[%s5 + $0xd8] sm:$0xff]
      %v1043 = vld [vmem:[%s5 + $0xe0] sm:$0xff]
      %v1044 = vld [vmem:[%s5 + $0xe8] sm:$0xff]
      %v1045 = vld [vmem:[%s5 + $0xf0] sm:$0xff]
      %v1046 = vld [vmem:[%s5 + $0xf8] sm:$0xff]
      %v1047 = vld [vmem:[%s5 + $0x100] sm:$0xff]
      %v1048 = vld [vmem:[%s5 + $0x108] sm:$0xff]
      %v1049 = vld [vmem:[%s5 + $0x110] sm:$0xff]
      %v1050 = vld [vmem:[%s5 + $0x118] sm:$0xff]
      %v1051 = vld [vmem:[%s5 + $0x120] sm:$0xff]
      %v1052 = vld [vmem:[%s5 + $0x128] sm:$0xff]
      %v1053 = vld [vmem:[%s5 + $0x130] sm:$0xff]
      %v1054 = vld [vmem:[%s5 + $0x138] sm:$0xff]
      %v1055 = vld [vmem:[%s5 + $0x140] sm:$0xff]
      %v1056 = vld [vmem:[%s5 + $0x148] sm:$0xff]
      %v1057 = vld [vmem:[%s5 + $0x150] sm:$0xff]
      %v1058 = vld [vmem:[%s5 + $0x158] sm:$0xff]
      %v1059 = vld [vmem:[%s5 + $0x160] sm:$0xff]
      %v1060 = vld [vmem:[%s5 + $0x168] sm:$0xff]
      %v1061 = vld [vmem:[%s5 + $0x170] sm:$0xff]
      %v1062 = vld [vmem:[%s5 + $0x178] sm:$0xff]
      %v1063 = vld [vmem:[%s5 + $0x180] sm:$0xff]
      %v1064 = vld [vmem:[%s5 + $0x188] sm:$0xff]
      %v1065 = vld [vmem:[%s5 + $0x190] sm:$0xff]
      %v1066 = vld [vmem:[%s5 + $0x198] sm:$0xff]
      %v1067 = vld [vmem:[%s5 + $0x1a0] sm:$0xff]
      %v1068 = vld [vmem:[%s5 + $0x1a8] sm:$0xff]
      %v1069 = vld [vmem:[%s5 + $0x1b0] sm:$0xff]
      %v1070 = vld [vmem:[%s5 + $0x1b8] sm:$0xff]
      %v1071 = vld [vmem:[%s5 + $0x1c0] sm:$0xff]
      %v1072 = vld [vmem:[%s5 + $0x1c8] sm:$0xff]
      %v1073 = vld [vmem:[%s5 + $0x1d0] sm:$0xff]
      %v1074 = vld [vmem:[%s5 + $0x1d8] sm:$0xff]
      %v1075 = vld [vmem:[%s5 + $0x1e0] sm:$0xff]
      %v1076 = vld [vmem:[%s5 + $0x1e8] sm:$0xff]
      %v1077 = vld [vmem:[%s5 + $0x1f0] sm:$0xff]
      %v1078 = vld [vmem:[%s5 + $0x1f8] sm:$0xff]
      %s1079 = scalar_lea.vmem %s5, 512
      %v1080 = vld [vmem:[%s1079] sm:$0xff]
      %v1081 = vld [vmem:[%s1079 + $0x8] sm:$0xff]
      %v1082 = vld [vmem:[%s1079 + $0x10] sm:$0xff]
      %v1083 = vld [vmem:[%s1079 + $0x18] sm:$0xff]
      %v1084 = vld [vmem:[%s1079 + $0x20] sm:$0xff]
      %v1085 = vld [vmem:[%s1079 + $0x28] sm:$0xff]
      %v1086 = vld [vmem:[%s1079 + $0x30] sm:$0xff]
      %v1087 = vld [vmem:[%s1079 + $0x38] sm:$0xff]
      %v1088 = vld [vmem:[%s1079 + $0x40] sm:$0xff]
      %v1089 = vld [vmem:[%s1079 + $0x48] sm:$0xff]
      %v1090 = vld [vmem:[%s1079 + $0x50] sm:$0xff]
      %v1091 = vld [vmem:[%s1079 + $0x58] sm:$0xff]
      %v1092 = vld [vmem:[%s1079 + $0x60] sm:$0xff]
      %v1093 = vld [vmem:[%s1079 + $0x68] sm:$0xff]
      %v1094 = vld [vmem:[%s1079 + $0x70] sm:$0xff]
      %v1095 = vld [vmem:[%s1079 + $0x78] sm:$0xff]
      %v1096 = vld [vmem:[%s1079 + $0x80] sm:$0xff]
      %v1097 = vld [vmem:[%s1079 + $0x88] sm:$0xff]
      %v1098 = vld [vmem:[%s1079 + $0x90] sm:$0xff]
      %v1099 = vld [vmem:[%s1079 + $0x98] sm:$0xff]
      %v1100 = vld [vmem:[%s1079 + $0xa0] sm:$0xff]
      %v1101 = vld [vmem:[%s1079 + $0xa8] sm:$0xff]
      %v1102 = vld [vmem:[%s1079 + $0xb0] sm:$0xff]
      %v1103 = vld [vmem:[%s1079 + $0xb8] sm:$0xff]
      %v1104 = vld [vmem:[%s1079 + $0xc0] sm:$0xff]
      %v1105 = vld [vmem:[%s1079 + $0xc8] sm:$0xff]
      %v1106 = vld [vmem:[%s1079 + $0xd0] sm:$0xff]
      %v1107 = vld [vmem:[%s1079 + $0xd8] sm:$0xff]
      %v1108 = vld [vmem:[%s1079 + $0xe0] sm:$0xff]
      %v1109 = vld [vmem:[%s1079 + $0xe8] sm:$0xff]
      %v1110 = vld [vmem:[%s1079 + $0xf0] sm:$0xff]
      %v1111 = vld [vmem:[%s1079 + $0xf8] sm:$0xff]
      %v1112 = vld [vmem:[%s1079 + $0x100] sm:$0xff]
      %v1113 = vld [vmem:[%s1079 + $0x108] sm:$0xff]
      %v1114 = vld [vmem:[%s1079 + $0x110] sm:$0xff]
      %v1115 = vld [vmem:[%s1079 + $0x118] sm:$0xff]
      %v1116 = vld [vmem:[%s1079 + $0x120] sm:$0xff]
      %v1117 = vld [vmem:[%s1079 + $0x128] sm:$0xff]
      %v1118 = vld [vmem:[%s1079 + $0x130] sm:$0xff]
      %v1119 = vld [vmem:[%s1079 + $0x138] sm:$0xff]
      %v1120 = vld [vmem:[%s1079 + $0x140] sm:$0xff]
      %v1121 = vld [vmem:[%s1079 + $0x148] sm:$0xff]
      %v1122 = vld [vmem:[%s1079 + $0x150] sm:$0xff]
      %v1123 = vld [vmem:[%s1079 + $0x158] sm:$0xff]
      %v1124 = vld [vmem:[%s1079 + $0x160] sm:$0xff]
      %v1125 = vld [vmem:[%s1079 + $0x168] sm:$0xff]
      %v1126 = vld [vmem:[%s1079 + $0x170] sm:$0xff]
      %v1127 = vld [vmem:[%s1079 + $0x178] sm:$0xff]
      %v1128 = vld [vmem:[%s1079 + $0x180] sm:$0xff]
      %v1129 = vld [vmem:[%s1079 + $0x188] sm:$0xff]
      %v1130 = vld [vmem:[%s1079 + $0x190] sm:$0xff]
      %v1131 = vld [vmem:[%s1079 + $0x198] sm:$0xff]
      %v1132 = vld [vmem:[%s1079 + $0x1a0] sm:$0xff]
      %v1133 = vld [vmem:[%s1079 + $0x1a8] sm:$0xff]
      %v1134 = vld [vmem:[%s1079 + $0x1b0] sm:$0xff]
      %v1135 = vld [vmem:[%s1079 + $0x1b8] sm:$0xff]
      %v1136 = vld [vmem:[%s1079 + $0x1c0] sm:$0xff]
      %v1137 = vld [vmem:[%s1079 + $0x1c8] sm:$0xff]
      %v1138 = vld [vmem:[%s1079 + $0x1d0] sm:$0xff]
      %v1139 = vld [vmem:[%s1079 + $0x1d8] sm:$0xff]
      %v1140 = vld [vmem:[%s1079 + $0x1e0] sm:$0xff]
      %v1141 = vld [vmem:[%s1079 + $0x1e8] sm:$0xff]
      %v1142 = vld [vmem:[%s1079 + $0x1f0] sm:$0xff]
      %v1143 = vld [vmem:[%s1079 + $0x1f8] sm:$0xff]
      %v1150 = vrot.slane %v1008, 1
      %v1151 = vrot.slane %v1010, 1
      %v1152 = vsel %vm459, %v1150, %v1151
      %v1153 = vrot.slane %v1009, 1
      %v1154 = vrot.slane %v1011, 1
      %v1155 = vsel %vm459, %v1153, %v1154
      %v1156 = vrot.slane %v1012, 1
      %v1157 = vsel %vm459, %v1151, %v1156
      %v1158 = vrot.slane %v1013, 1
      %v1159 = vsel %vm459, %v1154, %v1158
      %1164 = vmatpush.msra.mxu0 %v1110
      %1165 = vmatpush.msra.mxu0 %v1108
      %1166 = vmatpush.msra.mxu0 %v1106
      %1167 = vmatpush.msra.mxu0 %v1104
      %1168 = vmatpush.msra.mxu0 %v1102
      %1169 = vmatpush.msra.mxu0 %v1100
      %1170 = vmatpush.msra.mxu0 %v1098
      %1171 = vmatpush.msra.mxu0 %v1096
      %1172 = vmatpush.msra.mxu0 %v1094
      %1173 = vmatpush.msra.mxu0 %v1092
      %1174 = vmatpush.msra.mxu0 %v1090
      %1175 = vmatpush.msra.mxu0 %v1088
      %1176 = vmatpush.msra.mxu0 %v1086
      %1177 = vmatpush.msra.mxu0 %v1084
      %1178 = vmatpush.msra.mxu0 %v1082
      %1179 = vmatpush.msra.mxu0 %v1080
      %1180 = vmatmul.f32.gmra.mxu0 %v1152
      %v1181 = vpop.f32.mrf.mxu0
      %v1182 = vadd.f32 0.0, %v1181
      %1183 = vmatmul.f32.gmra.mxu0 %v1157
      %v1184 = vpop.f32.mrf.mxu0
      %v1185 = vadd.f32 0.0, %v1184
      %1186 = vdwg.mxu0
      %1187 = vmatpush.msra.mxu0 %v1142
      %1188 = vmatpush.msra.mxu0 %v1140
      %1189 = vmatpush.msra.mxu0 %v1138
      %1190 = vmatpush.msra.mxu0 %v1136
      %1191 = vmatpush.msra.mxu0 %v1134
      %1192 = vmatpush.msra.mxu0 %v1132
      %1193 = vmatpush.msra.mxu0 %v1130
      %1194 = vmatpush.msra.mxu0 %v1128
      %1195 = vmatpush.msra.mxu0 %v1126
      %1196 = vmatpush.msra.mxu0 %v1124
      %1197 = vmatpush.msra.mxu0 %v1122
      %1198 = vmatpush.msra.mxu0 %v1120
      %1199 = vmatpush.msra.mxu0 %v1118
      %1200 = vmatpush.msra.mxu0 %v1116
      %1201 = vmatpush.msra.mxu0 %v1114
      %1202 = vmatpush.msra.mxu0 %v1112
      %1203 = vmatmul.f32.gmra.mxu0 %v1155
      %v1204 = vpop.f32.mrf.mxu0
      %v1205 = vadd.f32 %v1182, %v1204
      %1206 = vmatmul.f32.gmra.mxu0 %v1159
      %v1207 = vpop.f32.mrf.mxu0
      %v1208 = vadd.f32 %v1185, %v1207
      %1209 = vdwg.mxu0
      %1210 = vmatpush.msra.mxu0 %v1111
      %1211 = vmatpush.msra.mxu0 %v1109
      %1212 = vmatpush.msra.mxu0 %v1107
      %1213 = vmatpush.msra.mxu0 %v1105
      %1214 = vmatpush.msra.mxu0 %v1103
      %1215 = vmatpush.msra.mxu0 %v1101
      %1216 = vmatpush.msra.mxu0 %v1099
      %1217 = vmatpush.msra.mxu0 %v1097
      %1218 = vmatpush.msra.mxu0 %v1095
      %1219 = vmatpush.msra.mxu0 %v1093
      %1220 = vmatpush.msra.mxu0 %v1091
      %1221 = vmatpush.msra.mxu0 %v1089
      %1222 = vmatpush.msra.mxu0 %v1087
      %1223 = vmatpush.msra.mxu0 %v1085
      %1224 = vmatpush.msra.mxu0 %v1083
      %1225 = vmatpush.msra.mxu0 %v1081
      %1226 = vmatmul.f32.gmra.mxu0 %v1152
      %v1227 = vpop.f32.mrf.mxu0
      %v1228 = vadd.f32 0.0, %v1227
      %1229 = vmatmul.f32.gmra.mxu0 %v1157
      %v1230 = vpop.f32.mrf.mxu0
      %v1231 = vadd.f32 0.0, %v1230
      %1232 = vdwg.mxu0
      %1233 = vmatpush.msra.mxu0 %v1143
      %1234 = vmatpush.msra.mxu0 %v1141
      %1235 = vmatpush.msra.mxu0 %v1139
      %1236 = vmatpush.msra.mxu0 %v1137
      %1237 = vmatpush.msra.mxu0 %v1135
      %1238 = vmatpush.msra.mxu0 %v1133
      %1239 = vmatpush.msra.mxu0 %v1131
      %1240 = vmatpush.msra.mxu0 %v1129
      %1241 = vmatpush.msra.mxu0 %v1127
      %1242 = vmatpush.msra.mxu0 %v1125
      %1243 = vmatpush.msra.mxu0 %v1123
      %1244 = vmatpush.msra.mxu0 %v1121
      %1245 = vmatpush.msra.mxu0 %v1119
      %1246 = vmatpush.msra.mxu0 %v1117
      %1247 = vmatpush.msra.mxu0 %v1115
      %1248 = vmatpush.msra.mxu0 %v1113
      %1249 = vmatmul.f32.gmra.mxu0 %v1155
      %v1250 = vpop.f32.mrf.mxu0
      %v1251 = vadd.f32 %v1228, %v1250
      %1252 = vmatmul.f32.gmra.mxu0 %v1159
      %v1253 = vpop.f32.mrf.mxu0
      %v1254 = vadd.f32 %v1231, %v1253
      %1255 = vdwg.mxu0
      %1256 = vmatpush.msra.mxu0 %v1045
      %1257 = vmatpush.msra.mxu0 %v1043
      %1258 = vmatpush.msra.mxu0 %v1041
      %1259 = vmatpush.msra.mxu0 %v1039
      %1260 = vmatpush.msra.mxu0 %v1037
      %1261 = vmatpush.msra.mxu0 %v1035
      %1262 = vmatpush.msra.mxu0 %v1033
      %1263 = vmatpush.msra.mxu0 %v1031
      %1264 = vmatpush.msra.mxu0 %v1029
      %1265 = vmatpush.msra.mxu0 %v1027
      %1266 = vmatpush.msra.mxu0 %v1025
      %1267 = vmatpush.msra.mxu0 %v1023
      %1268 = vmatpush.msra.mxu0 %v1021
      %1269 = vmatpush.msra.mxu0 %v1019
      %1270 = vmatpush.msra.mxu0 %v1017
      %1271 = vmatpush.msra.mxu0 %v1015
      %1272 = vmatmul.f32.gmra.mxu0 %v1008
      %v1273 = vpop.f32.mrf.mxu0
      %v1274 = vadd.f32 %v1205, %v1273
      %1275 = vmatmul.f32.gmra.mxu0 %v1010
      %v1276 = vpop.f32.mrf.mxu0
      %v1277 = vadd.f32 %v1208, %v1276
      %1278 = vdwg.mxu0
      %1279 = vmatpush.msra.mxu0 %v1077
      %1280 = vmatpush.msra.mxu0 %v1075
      %1281 = vmatpush.msra.mxu0 %v1073
      %1282 = vmatpush.msra.mxu0 %v1071
      %1283 = vmatpush.msra.mxu0 %v1069
      %1284 = vmatpush.msra.mxu0 %v1067
      %1285 = vmatpush.msra.mxu0 %v1065
      %1286 = vmatpush.msra.mxu0 %v1063
      %1287 = vmatpush.msra.mxu0 %v1061
      %1288 = vmatpush.msra.mxu0 %v1059
      %1289 = vmatpush.msra.mxu0 %v1057
      %1290 = vmatpush.msra.mxu0 %v1055
      %1291 = vmatpush.msra.mxu0 %v1053
      %1292 = vmatpush.msra.mxu0 %v1051
      %1293 = vmatpush.msra.mxu0 %v1049
      %1294 = vmatpush.msra.mxu0 %v1047
      %1295 = vmatmul.f32.gmra.mxu0 %v1009
      %v1296 = vpop.f32.mrf.mxu0
      %v1297 = vadd.f32 %v1274, %v1296
      %1298 = vmatmul.f32.gmra.mxu0 %v1011
      %v1299 = vpop.f32.mrf.mxu0
      %v1300 = vadd.f32 %v1277, %v1299
      %1301 = vdwg.mxu0
      %1302 = vmatpush.msra.mxu0 %v1046
      %1303 = vmatpush.msra.mxu0 %v1044
      %1304 = vmatpush.msra.mxu0 %v1042
      %1305 = vmatpush.msra.mxu0 %v1040
      %1306 = vmatpush.msra.mxu0 %v1038
      %1307 = vmatpush.msra.mxu0 %v1036
      %1308 = vmatpush.msra.mxu0 %v1034
      %1309 = vmatpush.msra.mxu0 %v1032
      %1310 = vmatpush.msra.mxu0 %v1030
      %1311 = vmatpush.msra.mxu0 %v1028
      %1312 = vmatpush.msra.mxu0 %v1026
      %1313 = vmatpush.msra.mxu0 %v1024
      %1314 = vmatpush.msra.mxu0 %v1022
      %1315 = vmatpush.msra.mxu0 %v1020
      %1316 = vmatpush.msra.mxu0 %v1018
      %1317 = vmatpush.msra.mxu0 %v1016
      %1318 = vmatmul.f32.gmra.mxu0 %v1008
      %v1319 = vpop.f32.mrf.mxu0
      %v1320 = vadd.f32 %v1251, %v1319
      %1321 = vmatmul.f32.gmra.mxu0 %v1010
      %v1322 = vpop.f32.mrf.mxu0
      %v1323 = vadd.f32 %v1254, %v1322
      %1324 = vdwg.mxu0
      %1325 = vmatpush.msra.mxu0 %v1078
      %1326 = vmatpush.msra.mxu0 %v1076
      %1327 = vmatpush.msra.mxu0 %v1074
      %1328 = vmatpush.msra.mxu0 %v1072
      %1329 = vmatpush.msra.mxu0 %v1070
      %1330 = vmatpush.msra.mxu0 %v1068
      %1331 = vmatpush.msra.mxu0 %v1066
      %1332 = vmatpush.msra.mxu0 %v1064
      %1333 = vmatpush.msra.mxu0 %v1062
      %1334 = vmatpush.msra.mxu0 %v1060
      %1335 = vmatpush.msra.mxu0 %v1058
      %1336 = vmatpush.msra.mxu0 %v1056
      %1337 = vmatpush.msra.mxu0 %v1054
      %1338 = vmatpush.msra.mxu0 %v1052
      %1339 = vmatpush.msra.mxu0 %v1050
      %1340 = vmatpush.msra.mxu0 %v1048
      %1341 = vmatmul.f32.gmra.mxu0 %v1009
      %v1342 = vpop.f32.mrf.mxu0
      %v1343 = vadd.f32 %v1320, %v1342
      %1344 = vmatmul.f32.gmra.mxu0 %v1011
      %v1345 = vpop.f32.mrf.mxu0
      %v1346 = vadd.f32 %v1323, %v1345
      %1347 = vdwg.mxu0
      %s1348 = scalar_lea.vmem %s5, 1024
      %v1349 = vld [vmem:[%s1348] sm:$0xff]
      %v1350 = vld [vmem:[%s1348 + $0x8] sm:$0xff]
      %v1351 = vld [vmem:[%s1348 + $0x10] sm:$0xff]
      %v1352 = vld [vmem:[%s1348 + $0x18] sm:$0xff]
      %v1353 = vld [vmem:[%s1348 + $0x20] sm:$0xff]
      %v1354 = vld [vmem:[%s1348 + $0x28] sm:$0xff]
      %v1355 = vld [vmem:[%s1348 + $0x30] sm:$0xff]
      %v1356 = vld [vmem:[%s1348 + $0x38] sm:$0xff]
      %v1357 = vld [vmem:[%s1348 + $0x40] sm:$0xff]
      %v1358 = vld [vmem:[%s1348 + $0x48] sm:$0xff]
      %v1359 = vld [vmem:[%s1348 + $0x50] sm:$0xff]
      %v1360 = vld [vmem:[%s1348 + $0x58] sm:$0xff]
      %v1361 = vld [vmem:[%s1348 + $0x60] sm:$0xff]
      %v1362 = vld [vmem:[%s1348 + $0x68] sm:$0xff]
      %v1363 = vld [vmem:[%s1348 + $0x70] sm:$0xff]
      %v1364 = vld [vmem:[%s1348 + $0x78] sm:$0xff]
      %v1365 = vld [vmem:[%s1348 + $0x80] sm:$0xff]
      %v1366 = vld [vmem:[%s1348 + $0x88] sm:$0xff]
      %v1367 = vld [vmem:[%s1348 + $0x90] sm:$0xff]
      %v1368 = vld [vmem:[%s1348 + $0x98] sm:$0xff]
      %v1369 = vld [vmem:[%s1348 + $0xa0] sm:$0xff]
      %v1370 = vld [vmem:[%s1348 + $0xa8] sm:$0xff]
      %v1371 = vld [vmem:[%s1348 + $0xb0] sm:$0xff]
      %v1372 = vld [vmem:[%s1348 + $0xb8] sm:$0xff]
      %v1373 = vld [vmem:[%s1348 + $0xc0] sm:$0xff]
      %v1374 = vld [vmem:[%s1348 + $0xc8] sm:$0xff]
      %v1375 = vld [vmem:[%s1348 + $0xd0] sm:$0xff]
      %v1376 = vld [vmem:[%s1348 + $0xd8] sm:$0xff]
      %v1377 = vld [vmem:[%s1348 + $0xe0] sm:$0xff]
      %v1378 = vld [vmem:[%s1348 + $0xe8] sm:$0xff]
      %v1379 = vld [vmem:[%s1348 + $0xf0] sm:$0xff]
      %v1380 = vld [vmem:[%s1348 + $0xf8] sm:$0xff]
      %v1381 = vld [vmem:[%s1348 + $0x100] sm:$0xff]
      %v1382 = vld [vmem:[%s1348 + $0x108] sm:$0xff]
      %v1383 = vld [vmem:[%s1348 + $0x110] sm:$0xff]
      %v1384 = vld [vmem:[%s1348 + $0x118] sm:$0xff]
      %v1385 = vld [vmem:[%s1348 + $0x120] sm:$0xff]
      %v1386 = vld [vmem:[%s1348 + $0x128] sm:$0xff]
      %v1387 = vld [vmem:[%s1348 + $0x130] sm:$0xff]
      %v1388 = vld [vmem:[%s1348 + $0x138] sm:$0xff]
      %v1389 = vld [vmem:[%s1348 + $0x140] sm:$0xff]
      %v1390 = vld [vmem:[%s1348 + $0x148] sm:$0xff]
      %v1391 = vld [vmem:[%s1348 + $0x150] sm:$0xff]
      %v1392 = vld [vmem:[%s1348 + $0x158] sm:$0xff]
      %v1393 = vld [vmem:[%s1348 + $0x160] sm:$0xff]
      %v1394 = vld [vmem:[%s1348 + $0x168] sm:$0xff]
      %v1395 = vld [vmem:[%s1348 + $0x170] sm:$0xff]
      %v1396 = vld [vmem:[%s1348 + $0x178] sm:$0xff]
      %v1397 = vld [vmem:[%s1348 + $0x180] sm:$0xff]
      %v1398 = vld [vmem:[%s1348 + $0x188] sm:$0xff]
      %v1399 = vld [vmem:[%s1348 + $0x190] sm:$0xff]
      %v1400 = vld [vmem:[%s1348 + $0x198] sm:$0xff]
      %v1401 = vld [vmem:[%s1348 + $0x1a0] sm:$0xff]
      %v1402 = vld [vmem:[%s1348 + $0x1a8] sm:$0xff]
      %v1403 = vld [vmem:[%s1348 + $0x1b0] sm:$0xff]
      %v1404 = vld [vmem:[%s1348 + $0x1b8] sm:$0xff]
      %v1405 = vld [vmem:[%s1348 + $0x1c0] sm:$0xff]
      %v1406 = vld [vmem:[%s1348 + $0x1c8] sm:$0xff]
      %v1407 = vld [vmem:[%s1348 + $0x1d0] sm:$0xff]
      %v1408 = vld [vmem:[%s1348 + $0x1d8] sm:$0xff]
      %v1409 = vld [vmem:[%s1348 + $0x1e0] sm:$0xff]
      %v1410 = vld [vmem:[%s1348 + $0x1e8] sm:$0xff]
      %v1411 = vld [vmem:[%s1348 + $0x1f0] sm:$0xff]
      %v1412 = vld [vmem:[%s1348 + $0x1f8] sm:$0xff]
      %v1413 = vrot.slane %v1008, 2
      %v1414 = vrot.slane %v1010, 2
      %v1415 = vsel %vm592, %v1413, %v1414
      %v1416 = vrot.slane %v1009, 2
      %v1417 = vrot.slane %v1011, 2
      %v1418 = vsel %vm592, %v1416, %v1417
      %v1419 = vrot.slane %v1012, 2
      %v1420 = vsel %vm592, %v1414, %v1419
      %v1421 = vrot.slane %v1013, 2
      %v1422 = vsel %vm592, %v1417, %v1421
      %1427 = vmatpush.msra.mxu0 %v1379
      %1428 = vmatpush.msra.mxu0 %v1377
      %1429 = vmatpush.msra.mxu0 %v1375
      %1430 = vmatpush.msra.mxu0 %v1373
      %1431 = vmatpush.msra.mxu0 %v1371
      %1432 = vmatpush.msra.mxu0 %v1369
      %1433 = vmatpush.msra.mxu0 %v1367
      %1434 = vmatpush.msra.mxu0 %v1365
      %1435 = vmatpush.msra.mxu0 %v1363
      %1436 = vmatpush.msra.mxu0 %v1361
      %1437 = vmatpush.msra.mxu0 %v1359
      %1438 = vmatpush.msra.mxu0 %v1357
      %1439 = vmatpush.msra.mxu0 %v1355
      %1440 = vmatpush.msra.mxu0 %v1353
      %1441 = vmatpush.msra.mxu0 %v1351
      %1442 = vmatpush.msra.mxu0 %v1349
      %1443 = vmatmul.f32.gmra.mxu0 %v1415
      %v1444 = vpop.f32.mrf.mxu0
      %v1445 = vadd.f32 0.0, %v1444
      %1446 = vmatmul.f32.gmra.mxu0 %v1420
      %v1447 = vpop.f32.mrf.mxu0
      %v1448 = vadd.f32 0.0, %v1447
      %1449 = vdwg.mxu0
      %1450 = vmatpush.msra.mxu0 %v1411
      %1451 = vmatpush.msra.mxu0 %v1409
      %1452 = vmatpush.msra.mxu0 %v1407
      %1453 = vmatpush.msra.mxu0 %v1405
      %1454 = vmatpush.msra.mxu0 %v1403
      %1455 = vmatpush.msra.mxu0 %v1401
      %1456 = vmatpush.msra.mxu0 %v1399
      %1457 = vmatpush.msra.mxu0 %v1397
      %1458 = vmatpush.msra.mxu0 %v1395
      %1459 = vmatpush.msra.mxu0 %v1393
      %1460 = vmatpush.msra.mxu0 %v1391
      %1461 = vmatpush.msra.mxu0 %v1389
      %1462 = vmatpush.msra.mxu0 %v1387
      %1463 = vmatpush.msra.mxu0 %v1385
      %1464 = vmatpush.msra.mxu0 %v1383
      %1465 = vmatpush.msra.mxu0 %v1381
      %1466 = vmatmul.f32.gmra.mxu0 %v1418
      %v1467 = vpop.f32.mrf.mxu0
      %v1468 = vadd.f32 %v1445, %v1467
      %1469 = vmatmul.f32.gmra.mxu0 %v1422
      %v1470 = vpop.f32.mrf.mxu0
      %v1471 = vadd.f32 %v1448, %v1470
      %1472 = vdwg.mxu0
      %1473 = vmatpush.msra.mxu0 %v1380
      %1474 = vmatpush.msra.mxu0 %v1378
      %1475 = vmatpush.msra.mxu0 %v1376
      %1476 = vmatpush.msra.mxu0 %v1374
      %1477 = vmatpush.msra.mxu0 %v1372
      %1478 = vmatpush.msra.mxu0 %v1370
      %1479 = vmatpush.msra.mxu0 %v1368
      %1480 = vmatpush.msra.mxu0 %v1366
      %1481 = vmatpush.msra.mxu0 %v1364
      %1482 = vmatpush.msra.mxu0 %v1362
      %1483 = vmatpush.msra.mxu0 %v1360
      %1484 = vmatpush.msra.mxu0 %v1358
      %1485 = vmatpush.msra.mxu0 %v1356
      %1486 = vmatpush.msra.mxu0 %v1354
      %1487 = vmatpush.msra.mxu0 %v1352
      %1488 = vmatpush.msra.mxu0 %v1350
      %1489 = vmatmul.f32.gmra.mxu0 %v1415
      %v1490 = vpop.f32.mrf.mxu0
      %v1491 = vadd.f32 0.0, %v1490
      %1492 = vmatmul.f32.gmra.mxu0 %v1420
      %v1493 = vpop.f32.mrf.mxu0
      %v1494 = vadd.f32 0.0, %v1493
      %1495 = vdwg.mxu0
      %1496 = vmatpush.msra.mxu0 %v1412
      %1497 = vmatpush.msra.mxu0 %v1410
      %1498 = vmatpush.msra.mxu0 %v1408
      %1499 = vmatpush.msra.mxu0 %v1406
      %1500 = vmatpush.msra.mxu0 %v1404
      %1501 = vmatpush.msra.mxu0 %v1402
      %1502 = vmatpush.msra.mxu0 %v1400
      %1503 = vmatpush.msra.mxu0 %v1398
      %1504 = vmatpush.msra.mxu0 %v1396
      %1505 = vmatpush.msra.mxu0 %v1394
      %1506 = vmatpush.msra.mxu0 %v1392
      %1507 = vmatpush.msra.mxu0 %v1390
      %1508 = vmatpush.msra.mxu0 %v1388
      %1509 = vmatpush.msra.mxu0 %v1386
      %1510 = vmatpush.msra.mxu0 %v1384
      %1511 = vmatpush.msra.mxu0 %v1382
      %1512 = vmatmul.f32.gmra.mxu0 %v1418
      %v1513 = vpop.f32.mrf.mxu0
      %v1514 = vadd.f32 %v1491, %v1513
      %1515 = vmatmul.f32.gmra.mxu0 %v1422
      %v1516 = vpop.f32.mrf.mxu0
      %v1517 = vadd.f32 %v1494, %v1516
      %1518 = vdwg.mxu0
      %v1519 = vadd.f32 %v1297, %v1468
      %v1520 = vadd.f32 %v1343, %v1514
      %v1521 = vadd.f32 %v1300, %v1471
      %v1522 = vadd.f32 %v1346, %v1517
      %v1524 = vperm.slane %v1014, 0
      %v1525 = vperm.slane %v1014, 1
      %v1528 = vadd.f32 %v1519, %v1524
      %v1529 = vadd.f32 %v1520, %v1525
      %v1530 = vadd.f32 %v1521, %v1524
      %v1531 = vadd.f32 %v1522, %v1525
      %v1532 = vld [vmem:[%s7] sm:$0x3]
      %v1533 = vld [vmem:[%s8] sm:$0x3]
      %v1534 = vld [vmem:[%s9] sm:$0xff]
      %v1535 = vld [vmem:[%s9 + $0x8] sm:$0xff]
      %v1536 = vld [vmem:[%s9 + $0x10] sm:$0xff]
      %v1537 = vld [vmem:[%s9 + $0x18] sm:$0xff]
      %v1538 = vld [vmem:[%s9 + $0x20] sm:$0xff]
      %v1539 = vld [vmem:[%s9 + $0x28] sm:$0xff]
      %v1540 = vld [vmem:[%s9 + $0x30] sm:$0xff]
      %v1541 = vld [vmem:[%s9 + $0x38] sm:$0xff]
      %v1542 = vld [vmem:[%s9 + $0x40] sm:$0xff]
      %v1543 = vld [vmem:[%s9 + $0x48] sm:$0xff]
      %v1544 = vld [vmem:[%s9 + $0x50] sm:$0xff]
      %v1545 = vld [vmem:[%s9 + $0x58] sm:$0xff]
      %v1546 = vld [vmem:[%s9 + $0x60] sm:$0xff]
      %v1547 = vld [vmem:[%s9 + $0x68] sm:$0xff]
      %v1548 = vld [vmem:[%s9 + $0x70] sm:$0xff]
      %v1549 = vld [vmem:[%s9 + $0x78] sm:$0xff]
      %v1550 = vld [vmem:[%s9 + $0x80] sm:$0xff]
      %v1551 = vld [vmem:[%s9 + $0x88] sm:$0xff]
      %v1552 = vld [vmem:[%s9 + $0x90] sm:$0xff]
      %v1553 = vld [vmem:[%s9 + $0x98] sm:$0xff]
      %v1554 = vld [vmem:[%s9 + $0xa0] sm:$0xff]
      %v1555 = vld [vmem:[%s9 + $0xa8] sm:$0xff]
      %v1556 = vld [vmem:[%s9 + $0xb0] sm:$0xff]
      %v1557 = vld [vmem:[%s9 + $0xb8] sm:$0xff]
      %v1558 = vld [vmem:[%s9 + $0xc0] sm:$0xff]
      %v1559 = vld [vmem:[%s9 + $0xc8] sm:$0xff]
      %v1560 = vld [vmem:[%s9 + $0xd0] sm:$0xff]
      %v1561 = vld [vmem:[%s9 + $0xd8] sm:$0xff]
      %v1562 = vld [vmem:[%s9 + $0xe0] sm:$0xff]
      %v1563 = vld [vmem:[%s9 + $0xe8] sm:$0xff]
      %v1564 = vld [vmem:[%s9 + $0xf0] sm:$0xff]
      %v1565 = vld [vmem:[%s9 + $0xf8] sm:$0xff]
      %v1566 = vld [vmem:[%s10] sm:$0xf]
      %1567 = vmatpush.msra.mxu0 %v1549
      %1568 = vmatpush.msra.mxu0 %v1548
      %1569 = vmatpush.msra.mxu0 %v1547
      %1570 = vmatpush.msra.mxu0 %v1546
      %1571 = vmatpush.msra.mxu0 %v1545
      %1572 = vmatpush.msra.mxu0 %v1544
      %1573 = vmatpush.msra.mxu0 %v1543
      %1574 = vmatpush.msra.mxu0 %v1542
      %1575 = vmatpush.msra.mxu0 %v1541
      %1576 = vmatpush.msra.mxu0 %v1540
      %1577 = vmatpush.msra.mxu0 %v1539
      %1578 = vmatpush.msra.mxu0 %v1538
      %1579 = vmatpush.msra.mxu0 %v1537
      %1580 = vmatpush.msra.mxu0 %v1536
      %1581 = vmatpush.msra.mxu0 %v1535
      %1582 = vmatpush.msra.mxu0 %v1534
      %1583 = vmatmul.f32.gmra.mxu0 %v1528
      %v1584 = vpop.f32.mrf.mxu0
      %v1585 = vadd.f32 0.0, %v1584
      %1586 = vmatmul.f32.gmra.mxu0 %v1530
      %v1587 = vpop.f32.mrf.mxu0
      %v1588 = vadd.f32 0.0, %v1587
      %1589 = vdwg.mxu0
      %1590 = vmatpush.msra.mxu0 %v1565
      %1591 = vmatpush.msra.mxu0 %v1564
      %1592 = vmatpush.msra.mxu0 %v1563
      %1593 = vmatpush.msra.mxu0 %v1562
      %1594 = vmatpush.msra.mxu0 %v1561
      %1595 = vmatpush.msra.mxu0 %v1560
      %1596 = vmatpush.msra.mxu0 %v1559
      %1597 = vmatpush.msra.mxu0 %v1558
      %1598 = vmatpush.msra.mxu0 %v1557
      %1599 = vmatpush.msra.mxu0 %v1556
      %1600 = vmatpush.msra.mxu0 %v1555
      %1601 = vmatpush.msra.mxu0 %v1554
      %1602 = vmatpush.msra.mxu0 %v1553
      %1603 = vmatpush.msra.mxu0 %v1552
      %1604 = vmatpush.msra.mxu0 %v1551
      %1605 = vmatpush.msra.mxu0 %v1550
      %1606 = vmatmul.f32.gmra.mxu0 %v1529
      %v1607 = vpop.f32.mrf.mxu0
      %v1608 = vadd.f32 %v1585, %v1607
      %1609 = vmatmul.f32.gmra.mxu0 %v1531
      %v1610 = vpop.f32.mrf.mxu0
      %v1611 = vadd.f32 %v1588, %v1610
      %1612 = vdwg.mxu0
      %v1613 = vsel %vm740, %v1608, 0.0
      %v1614 = vsel %vm740, %v1611, 0.0
      %v1615 = vadd.f32 %v1613, %v1614
      %v1616 = vrot.slane %v1615, 4
      %v1617 = vadd.f32 %v1615, %v1616
      %v1618 = vrot.slane %v1617, 2
      %v1619 = vadd.f32 %v1617, %v1618
      %v1620 = vrot.slane %v1619, 1
      %v1621 = vadd.f32 %v1619, %v1620
      %v1622 = vmul.f32 %v1621, 0.00048828125
      %1624 = vst [vmem:[#allocation1] ss:$4 sm:$0xff] %v1566
      %v1625 = vld.sshfl [vmem:[#allocation1] sm:$0xff pattern:$0x73625140]
      %v1626 = vld.sshfl [vmem:[#allocation1 + $0x8] sm:$0xff pattern:$0x73625140]
      %v1628 = vsel %vm740, %v1622, 0
      %v1630 = vsel %vm758, %v1625, 0
      %v1632 = vsel %vm758, %v1626, 0
      %1634 = vmatpush.msra.mxu0 0.0
      %1635 = vmatpush.msra.mxu0 0.0
      %1636 = vmatpush.msra.mxu0 0.0
      %1637 = vmatpush.msra.mxu0 0.0
      %1638 = vmatpush.msra.mxu0 0.0
      %1639 = vmatpush.msra.mxu0 0.0
      %1640 = vmatpush.msra.mxu0 0.0
      %1641 = vmatpush.msra.mxu0 0.0
      %1642 = vmatpush.msra.mxu0 0.0
      %1643 = vmatpush.msra.mxu0 0.0
      %1644 = vmatpush.msra.mxu0 0.0
      %1645 = vmatpush.msra.mxu0 0.0
      %1646 = vmatpush.msra.mxu0 0.0
      %1647 = vmatpush.msra.mxu0 0.0
      %1648 = vmatpush.msra.mxu0 0.0
      %1649 = vmatpush.msra.mxu0 %v1630
      %1650 = vmatmul.f32.gmra.mxu0 %v1628
      %v1651 = vpop.f32.mrf.mxu0
      %v1652 = vadd.f32 0.0, %v1651
      %1653 = vdwg.mxu0
      %1654 = vmatpush.msra.mxu0 0.0
      %1655 = vmatpush.msra.mxu0 0.0
      %1656 = vmatpush.msra.mxu0 0.0
      %1657 = vmatpush.msra.mxu0 0.0
      %1658 = vmatpush.msra.mxu0 0.0
      %1659 = vmatpush.msra.mxu0 0.0
      %1660 = vmatpush.msra.mxu0 0.0
      %1661 = vmatpush.msra.mxu0 0.0
      %1662 = vmatpush.msra.mxu0 0.0
      %1663 = vmatpush.msra.mxu0 0.0
      %1664 = vmatpush.msra.mxu0 0.0
      %1665 = vmatpush.msra.mxu0 0.0
      %1666 = vmatpush.msra.mxu0 0.0
      %1667 = vmatpush.msra.mxu0 0.0
      %1668 = vmatpush.msra.mxu0 0.0
      %1669 = vmatpush.msra.mxu0 %v1632
      %1670 = vmatmul.f32.gmra.mxu0 %v1628
      %v1671 = vpop.f32.mrf.mxu0
      %v1672 = vadd.f32 0.0, %v1671
      %1673 = vdwg.mxu0
      %v1674 = vperm.slane %v1652, 0
      %v1675 = vperm.slane %v1672, 0
      %v1676 = vsub.f32 %v1528, %v1674
      %v1677 = vsub.f32 %v1529, %v1675
      %v1678 = vsub.f32 %v1530, %v1674
      %v1679 = vsub.f32 %v1531, %v1675
      %v1680 = vmul.f32 %v1676, %v1676
      %v1681 = vmul.f32 %v1677, %v1677
      %v1682 = vmul.f32 %v1678, %v1678
      %v1683 = vmul.f32 %v1679, %v1679
      %1684 = vmatpush.msra.mxu0 %v1549
      %1685 = vmatpush.msra.mxu0 %v1548
      %1686 = vmatpush.msra.mxu0 %v1547
      %1687 = vmatpush.msra.mxu0 %v1546
      %1688 = vmatpush.msra.mxu0 %v1545
      %1689 = vmatpush.msra.mxu0 %v1544
      %1690 = vmatpush.msra.mxu0 %v1543
      %1691 = vmatpush.msra.mxu0 %v1542
      %1692 = vmatpush.msra.mxu0 %v1541
      %1693 = vmatpush.msra.mxu0 %v1540
      %1694 = vmatpush.msra.mxu0 %v1539
      %1695 = vmatpush.msra.mxu0 %v1538
      %1696 = vmatpush.msra.mxu0 %v1537
      %1697 = vmatpush.msra.mxu0 %v1536
      %1698 = vmatpush.msra.mxu0 %v1535
      %1699 = vmatpush.msra.mxu0 %v1534
      %1700 = vmatmul.f32.gmra.mxu0 %v1680
      %v1701 = vpop.f32.mrf.mxu0
      %v1702 = vadd.f32 0.0, %v1701
      %1703 = vmatmul.f32.gmra.mxu0 %v1682
      %v1704 = vpop.f32.mrf.mxu0
      %v1705 = vadd.f32 0.0, %v1704
      %1706 = vdwg.mxu0
      %1707 = vmatpush.msra.mxu0 %v1565
      %1708 = vmatpush.msra.mxu0 %v1564
      %1709 = vmatpush.msra.mxu0 %v1563
      %1710 = vmatpush.msra.mxu0 %v1562
      %1711 = vmatpush.msra.mxu0 %v1561
      %1712 = vmatpush.msra.mxu0 %v1560
      %1713 = vmatpush.msra.mxu0 %v1559
      %1714 = vmatpush.msra.mxu0 %v1558
      %1715 = vmatpush.msra.mxu0 %v1557
      %1716 = vmatpush.msra.mxu0 %v1556
      %1717 = vmatpush.msra.mxu0 %v1555
      %1718 = vmatpush.msra.mxu0 %v1554
      %1719 = vmatpush.msra.mxu0 %v1553
      %1720 = vmatpush.msra.mxu0 %v1552
      %1721 = vmatpush.msra.mxu0 %v1551
      %1722 = vmatpush.msra.mxu0 %v1550
      %1723 = vmatmul.f32.gmra.mxu0 %v1681
      %v1724 = vpop.f32.mrf.mxu0
      %v1725 = vadd.f32 %v1702, %v1724
      %1726 = vmatmul.f32.gmra.mxu0 %v1683
      %v1727 = vpop.f32.mrf.mxu0
      %v1728 = vadd.f32 %v1705, %v1727
      %1729 = vdwg.mxu0
      %v1730 = vsel %vm740, %v1725, 0.0
      %v1731 = vsel %vm740, %v1728, 0.0
      %v1732 = vadd.f32 %v1730, %v1731
      %v1733 = vrot.slane %v1732, 4
      %v1734 = vadd.f32 %v1732, %v1733
      %v1735 = vrot.slane %v1734, 2
      %v1736 = vadd.f32 %v1734, %v1735
      %v1737 = vrot.slane %v1736, 1
      %v1738 = vadd.f32 %v1736, %v1737
      %v1739 = vmul.f32 %v1738, 0.00048828125
      %v1740 = vadd.f32 %v1739, 1e-05
      %v1741 = vrsqrt.pop %v1740
      %v1742 = vmul.f32 %v1741, %v1740
      %v1743 = vmul.f32 %v1742, %v1741
      %v1744 = vmul.f32 0.5, %v1743
      %v1745 = vsub.f32 1.5, %v1744
      %v1746 = vmul.f32 %v1741, %v1745
      %vm1747 = vweird.f32 %v1740
      %vm1748 = vweird.f32 %v1741
      %vm1749 = vmor %vm1747, %vm1748
      %v1750 = vsel %vm1749, %v1741, %v1746
      %1751 = vst [vmem:[#allocation1] ss:$4 sm:$0xff] %v1566
      %v1752 = vld.sshfl [vmem:[#allocation1] sm:$0xff pattern:$0x73625140]
      %v1753 = vld.sshfl [vmem:[#allocation1 + $0x8] sm:$0xff pattern:$0x73625140]
      %v1755 = vsel %vm740, %v1750, 0
      %v1757 = vsel %vm758, %v1752, 0
      %v1759 = vsel %vm758, %v1753, 0
      %1761 = vmatpush.msra.mxu0 0.0
      %1762 = vmatpush.msra.mxu0 0.0
      %1763 = vmatpush.msra.mxu0 0.0
      %1764 = vmatpush.msra.mxu0 0.0
      %1765 = vmatpush.msra.mxu0 0.0
      %1766 = vmatpush.msra.mxu0 0.0
      %1767 = vmatpush.msra.mxu0 0.0
      %1768 = vmatpush.msra.mxu0 0.0
      %1769 = vmatpush.msra.mxu0 0.0
      %1770 = vmatpush.msra.mxu0 0.0
      %1771 = vmatpush.msra.mxu0 0.0
      %1772 = vmatpush.msra.mxu0 0.0
      %1773 = vmatpush.msra.mxu0 0.0
      %1774 = vmatpush.msra.mxu0 0.0
      %1775 = vmatpush.msra.mxu0 0.0
      %1776 = vmatpush.msra.mxu0 %v1757
      %1777 = vmatmul.f32.gmra.mxu0 %v1755
      %v1778 = vpop.f32.mrf.mxu0
      %v1779 = vadd.f32 0.0, %v1778
      %1780 = vdwg.mxu0
      %1781 = vmatpush.msra.mxu0 0.0
      %1782 = vmatpush.msra.mxu0 0.0
      %1783 = vmatpush.msra.mxu0 0.0
      %1784 = vmatpush.msra.mxu0 0.0
      %1785 = vmatpush.msra.mxu0 0.0
      %1786 = vmatpush.msra.mxu0 0.0
      %1787 = vmatpush.msra.mxu0 0.0
      %1788 = vmatpush.msra.mxu0 0.0
      %1789 = vmatpush.msra.mxu0 0.0
      %1790 = vmatpush.msra.mxu0 0.0
      %1791 = vmatpush.msra.mxu0 0.0
      %1792 = vmatpush.msra.mxu0 0.0
      %1793 = vmatpush.msra.mxu0 0.0
      %1794 = vmatpush.msra.mxu0 0.0
      %1795 = vmatpush.msra.mxu0 0.0
      %1796 = vmatpush.msra.mxu0 %v1759
      %1797 = vmatmul.f32.gmra.mxu0 %v1755
      %v1798 = vpop.f32.mrf.mxu0
      %v1799 = vadd.f32 0.0, %v1798
      %1800 = vdwg.mxu0
      %v1802 = vperm.slane %v1532, 0
      %v1803 = vperm.slane %v1532, 1
      %v1806 = vmul.f32 %v1779, %v1802
      %v1807 = vmul.f32 %v1799, %v1803
      %v1808 = vperm.slane %v1806, 0
      %v1809 = vperm.slane %v1807, 0
      %v1810 = vmul.f32 %v1676, %v1808
      %v1811 = vmul.f32 %v1677, %v1809
      %v1812 = vmul.f32 %v1678, %v1808
      %v1813 = vmul.f32 %v1679, %v1809
      %v1815 = vperm.slane %v1533, 0
      %v1816 = vperm.slane %v1533, 1
      %v1819 = vadd.f32 %v1810, %v1815
      %v1820 = vadd.f32 %v1811, %v1816
      %v1821 = vadd.f32 %v1812, %v1815
      %v1822 = vadd.f32 %v1813, %v1816
      %vm1823 = vcmp.gt.f32.partialorder %v1819, 0.0
      %vm1824 = vcmp.gt.f32.partialorder %v1820, 0.0
      %vm1825 = vcmp.gt.f32.partialorder %v1821, 0.0
      %vm1826 = vcmp.gt.f32.partialorder %v1822, 0.0
      %v1827 = vmin.f32 %v1819, 0.0
      %v1828 = vmin.f32 %v1820, 0.0
      %v1829 = vmin.f32 %v1821, 0.0
      %v1830 = vmin.f32 %v1822, 0.0
      %v1831 = vmul.f32 %v1827, 1.442695
      %v1832 = vpow.pop %v1831
      %v1833 = vmul.f32 %v1828, 1.442695
      %v1834 = vpow.pop %v1833
      %v1835 = vmul.f32 %v1829, 1.442695
      %v1836 = vpow.pop %v1835
      %v1837 = vmul.f32 %v1830, 1.442695
      %v1838 = vpow.pop %v1837
      %v1839 = vsub.f32 %v1832, 1.0
      %v1840 = vsub.f32 %v1834, 1.0
      %v1841 = vsub.f32 %v1836, 1.0
      %v1842 = vsub.f32 %v1838, 1.0
      %v1843 = vsel %vm1823, %v1819, %v1839
      %v1844 = vsel %vm1824, %v1820, %v1840
      %v1845 = vsel %vm1825, %v1821, %v1841
      %v1846 = vsel %vm1826, %v1822, %v1842
      %1847 = vst [vmem:[%s386] sm:$0xff] %v1843
      %1848 = vst [vmem:[%s386 + $0x8] sm:$0xff] %v1844
      %1849 = vst [vmem:[%s386 + $0x10] sm:$0xff] %v1845
      %1850 = vst [vmem:[%s386 + $0x18] sm:$0xff] %v1846
      %p1851 = scmp.lt.s32.totalorder %s22, 1
      %s1852 = scalar_select %p1851, %s22, 1
      %s1853 = smul.addr %s1852, 4
      %s1854 = smul.addr %s1853, 8
      %s1855 = scalar_lea.vmem %s11, %s1854
      // Predicated region
      $region65: #{double_conv_forward.1} parent=63 // pred_check
        %p1856 = pneg %p276
      $region66: #{double_conv_forward.1} parent=63 // pred_check_branch
        %1858 = sbr.rel (%p1856) target = $region68
      $region67: #{double_conv_forward.1} parent=63 // pred_region
        _
      $region68: #{double_conv_forward.1} parent=63 // pred_fallthru
        _
    $region64: #{double_conv_forward.1} parent=5 // pred_fallthru
      _
    %p1859 = scmp.le.s32.totalorder 2, %s17
    // Predicated region
    $region69: #{double_conv_forward.1} parent=5 // pred_check
      %p1860 = pneg %p1859
    $region70: #{double_conv_forward.1} parent=5 // pred_check_branch
      %1862 = sbr.rel (%p1860) target = $region72
    $region71: #{double_conv_forward.1} parent=5 // pred_region
      %s1863 = ssub.s32 %s17, 2
      // Predicated region
      $region73: #{double_conv_forward.1} parent=71 // pred_check
        %p1864 = pneg %p282
      $region74: #{double_conv_forward.1} parent=71 // pred_check_branch
        %1866 = sbr.rel (%p1864) target = $region76
      $region75: #{double_conv_forward.1} parent=71 // pred_region
        %p1867 = scmp.lt.s32.totalorder %s23, 1
        %s1868 = scalar_select %p1867, %s23, 1
        %s1869 = smul.addr %s1868, 4
        %s1870 = smul.addr %s1869, 8
        %s1871 = scalar_lea.vmem %s11, %s1870
      $region76: #{double_conv_forward.1} parent=71 // pred_fallthru
        _
    $region72: #{double_conv_forward.1} parent=5 // pred_fallthru
      _
  $region6: #{double_conv_forward.1} parent=0 // loop_footer
    %s21 = sadd.s32 1, %s17
  $region7: #{double_conv_forward.1} parent=0 // loop_footer_branch
    %16 = sbr.rel target = $region3
  $region8: #{double_conv_forward.1} parent=0 // loop_exit
    _

</llo_original>
